<compile_context>
chip_gen: v5e
topology: v5e:2x2
jax: 0.10.0
libtpu: 0.0.40
codegen_flags: <defaults>
</compile_context>

<pallas_src>
import functools

import jax
import jax.numpy as jnp
import numpy as np
from jax.experimental import pallas as pl
from jax.experimental.pallas import tpu as pltpu

BN_EPS = 1e-5

VMEM = pl.BlockSpec(memory_space=pltpu.MemorySpace.VMEM)
ANY = pl.BlockSpec(memory_space=pl.ANY)          # raw HBM ref, streamed manually


# ---------------------------------------------------------------------------
# Math helpers (pure jnp; used both inside the kernel and by the JAX reference)
# ---------------------------------------------------------------------------
def _bn(y, g, beta):
    """Training-mode BatchNorm1d (biased batch stats) folded into scale/shift.

    Single-pass statistics with the variance clamped at >= 0 so rsqrt can never see a
    (cancellation-induced) negative value.
    """
    mean = jnp.mean(y, axis=0, keepdims=True)
    mean_sq = jnp.mean(y * y, axis=0, keepdims=True)
    var = jnp.maximum(mean_sq - mean * mean, 0.0)
    scale = g * jax.lax.rsqrt(var + BN_EPS)
    shift = beta - mean * scale
    return y * scale + shift


def _linear_bn(h, w_bf16, g, beta, relu):
    """Linear (bf16 MXU, f32 accumulate) + folded BatchNorm (+ optional ReLU).

    The linear bias is omitted on purpose: a per-column constant added before a
    training-mode BatchNorm cancels exactly in the mean subtraction.
    """
    y = jnp.dot(h.astype(jnp.bfloat16), w_bf16, preferred_element_type=jnp.float32)
    y = _bn(y, g, beta)
    return jnp.maximum(y, 0.0) if relu else y


# ---------------------------------------------------------------------------
# Fused VAE forward kernel
# ---------------------------------------------------------------------------
def vae_kernel(
    h0_ref, eps_ref,
    g0_ref, be0_ref,
    w1_ref, g1_ref, be1_ref,
    enc_w_hbm, enc_g_ref, enc_be_ref,
    whead_ref, ghead_ref, behead_ref,
    w4_ref, g4_ref, be4_ref,
    dec_w_hbm, dec_g_ref, dec_be_ref,
    wrec_ref, grec_ref, berec_ref,
    rec_ref, mulv_ref,
    ew_buf, ew_sem, dw_buf, dw_sem,
    *, hidden_layers, zdims,
):
    L = hidden_layers

    # Kick off the HBM -> VMEM fetch of encoder layer 0 so it overlaps bn0 + fc1.
    if L > 0:
        pltpu.make_async_copy(enc_w_hbm.at[0], ew_buf.at[0], ew_sem.at[0]).start()

    # ---------------- encode ----------------
    h = jnp.maximum(_bn(h0_ref[...], g0_ref[...], be0_ref[...]), 0.0)      # bn0 + relu
    h = _linear_bn(h, w1_ref[...], g1_ref[...], be1_ref[...], relu=True)   # fc1 + bn1

    # Encoder stack: stream one layer's [H, H] weights at a time, double buffered
    # (prefetch layer i+1 while computing layer i).
    for i in range(L):
        slot = i & 1
        pltpu.make_async_copy(enc_w_hbm.at[i], ew_buf.at[slot], ew_sem.at[slot]).wait()
        if i + 1 < L:
            pltpu.make_async_copy(enc_w_hbm.at[i + 1], ew_buf.at[1 - slot],
                                  ew_sem.at[1 - slot]).start()
        h = _linear_bn(h, ew_buf[slot], enc_g_ref[i], enc_be_ref[i], relu=True)

    # Prefetch decoder layer 0 while the head / reparameterize / fc4 run.
    if L > 0:
        pltpu.make_async_copy(dec_w_hbm.at[0], dw_buf.at[0], dw_sem.at[0]).start()

    # Fused mu|logvar head: one [B,H]x[H,2Z] matmul + one fused BN, written as a single
    # lane-dense [B, 2Z] slab (split in the wrapper).
    mulv = _linear_bn(h, whead_ref[...], ghead_ref[...], behead_ref[...], relu=False)
    mulv_ref[...] = mulv
    mu = mulv[:, :zdims]
    logvar = mulv[:, zdims:]

    # ------------- reparameterize -------------
    # z = mu + eps * exp(0.5 * logvar), eps ~ U[0, 1) (torch.rand_like semantics).
    z = mu + eps_ref[...] * jnp.exp(0.5 * logvar)

    # ---------------- decode ----------------
    h2 = _linear_bn(z, w4_ref[...], g4_ref[...], be4_ref[...], relu=True)  # fc4 + bn4
    for i in range(L):
        slot = i & 1
        pltpu.make_async_copy(dec_w_hbm.at[i], dw_buf.at[slot], dw_sem.at[slot]).wait()
        if i + 1 < L:
            pltpu.make_async_copy(dec_w_hbm.at[i + 1], dw_buf.at[1 - slot],
                                  dw_sem.at[1 - slot]).start()
        h2 = _linear_bn(h2, dw_buf[slot], dec_g_ref[i], dec_be_ref[i], relu=True)

    # fc4toreconstructed + bn + relu -> lane-dense [B, F] slab (fc5 applied outside,
    # fused by XLA with the [B, F] -> [B, F, 2] layout expansion).
    h2 = _linear_bn(h2, wrec_ref[...], grec_ref[...], berec_ref[...], relu=True)
    rec_ref[...] = h2


# ---------------------------------------------------------------------------
# Wrapper
# ---------------------------------------------------------------------------
def vae_forward(x, kp, eps, hidden_layers):
    B, F, _ = x.shape
    H = kp["w1"].shape[1]
    Z2 = kp["whead"].shape[1]
    Z = Z2 // 2

    xf = x.astype(jnp.float32)
    # fc0: Linear(2 -> 1) per (batch, feature) pair.  Evaluated at the XLA boundary so
    # it fuses with the unavoidable [B, F, 2] -> [B, F] layout change (no strided
    # trailing-dim-2 transpose feeding the kernel).
    h0 = xf[..., 0] * kp["w0"][0, 0] + xf[..., 1] * kp["w0"][0, 1] + kp["b0"][0, 0]

    args = (
        h0, eps,
        kp["g0"], kp["be0"],
        kp["w1"], kp["g1"], kp["be1"],
        kp["enc_w"], kp["enc_g"], kp["enc_be"],
        kp["whead"], kp["ghead"], kp["behead"],
        kp["w4"], kp["g4"], kp["be4"],
        kp["dec_w"], kp["dec_g"], kp["dec_be"],
        kp["wrec"], kp["grec"], kp["berec"],
    )
    in_specs = [
        VMEM, VMEM,            # h0 (fc0 output), eps
        VMEM, VMEM,            # bn0
        VMEM, VMEM, VMEM,      # fc1 / bn1
        ANY, VMEM, VMEM,       # encoder weight stack (HBM, streamed) + BN params
        VMEM, VMEM, VMEM,      # fused mu|logvar head
        VMEM, VMEM, VMEM,      # fc4 / bn4
        ANY, VMEM, VMEM,       # decoder weight stack (HBM, streamed) + BN params
        VMEM, VMEM, VMEM,      # fc4toreconstructed / bn
    ]

    out_shapes = (
        jax.ShapeDtypeStruct((B, F), jnp.float32),    # pre-fc5 reconstruction slab
        jax.ShapeDtypeStruct((B, Z2), jnp.float32),   # mu | logvar fused slab
    )

    scratch = [
        pltpu.VMEM((2, H, H), jnp.bfloat16),   # encoder weight double-buffer
        pltpu.SemaphoreType.DMA((2,)),
        pltpu.VMEM((2, H, H), jnp.bfloat16),   # decoder weight double-buffer
        pltpu.SemaphoreType.DMA((2,)),
    ]

    # Scoped-VMEM limit sized from what actually lives in VMEM (+ headroom).
    resident = (sum(int(np.prod(a.shape)) * a.dtype.itemsize
                    for a, s in zip(args, in_specs) if s is not ANY)
                + sum(int(np.prod(o.shape)) * 4 for o in out_shapes)
                + 2 * 2 * H * H * 2)
    vmem_limit = int(min(64 << 20, max(16 << 20, 2 * resident + (2 << 20))))

    L = hidden_layers
    flops = 2 * B * (F * H + 2 * L * H * H + H * Z2 + Z * H + H * F)
    bytes_accessed = int(sum(int(np.prod(a.shape)) * a.dtype.itemsize for a in args)
                         + sum(int(np.prod(o.shape)) * 4 for o in out_shapes)
                         + x.size * 4)
    cost = pl.CostEstimate(flops=int(flops), transcendentals=int(B * Z),
                           bytes_accessed=bytes_accessed)

    kernel = functools.partial(vae_kernel, hidden_layers=hidden_layers, zdims=Z)
    rec, mulv = pl.pallas_call(
        kernel,
        out_shape=out_shapes,
        in_specs=in_specs,
        out_specs=(VMEM, VMEM),
        scratch_shapes=scratch,
        compiler_params=pltpu.CompilerParams(vmem_limit_bytes=vmem_limit),
        cost_estimate=cost,
    )(*args)

    mu = mulv[:, :Z]
    logvar = mulv[:, Z:]
    # fc5: Linear(1 -> 2) broadcast over [B, F]; fused by XLA with the [B, F] ->
    # [B, F, 2] layout expansion (no strided transpose, contiguous write).
    recon = rec[:, :, None] * kp["w5"][0] + kp["b5"][0]
    return recon, mu, logvar


# ---------------------------------------------------------------------------
# Pure-JAX reference (same prepared params / same math) for a numerical check
# ---------------------------------------------------------------------------
def vae_reference(x, kp, eps, hidden_layers):
    Z = kp["whead"].shape[1] // 2
    xf = x.astype(jnp.float32)
    h = xf[..., 0] * kp["w0"][0, 0] + xf[..., 1] * kp["w0"][0, 1] + kp["b0"][0, 0]
    h = jnp.maximum(_bn(h, kp["g0"], kp["be0"]), 0.0)
    h = _linear_bn(h, kp["w1"], kp["g1"], kp["be1"], relu=True)
    for i in range(hidden_layers):
        h = _linear_bn(h, kp["enc_w"][i], kp["enc_g"][i], kp["enc_be"][i], relu=True)
    mulv = _linear_bn(h, kp["whead"], kp["ghead"], kp["behead"], relu=False)
    mu, logvar = mulv[:, :Z], mulv[:, Z:]
    z = mu + eps * jnp.exp(0.5 * logvar)
    h2 = _linear_bn(z, kp["w4"], kp["g4"], kp["be4"], relu=True)
    for i in range(hidden_layers):
        h2 = _linear_bn(h2, kp["dec_w"][i], kp["dec_g"][i], kp["dec_be"][i], relu=True)
    h2 = _linear_bn(h2, kp["wrec"], kp["grec"], kp["berec"], relu=True)
    recon = h2[:, :, None] * kp["w5"][0] + kp["b5"][0]
    return recon, mu, logvar


# ---------------------------------------------------------------------------
# Parameter init (deterministic, mirrors nn.Linear / nn.BatchNorm1d defaults)
# ---------------------------------------------------------------------------
def _init_linear(key, fan_in, fan_out):
    k1, k2 = jax.random.split(key)
    bound = 1.0 / np.sqrt(fan_in)
    w = jax.random.uniform(k1, (fan_in, fan_out), jnp.float32, -bound, bound)
    b = jax.random.uniform(k2, (1, fan_out), jnp.float32, -bound, bound)
    return w, b


def _init_bn(dim):
    return jnp.ones((1, dim), jnp.float32), jnp.zeros((1, dim), jnp.float32)


def init_vae_params(key, input_features, zdims, hidden_units, hidden_layers):
    n_keys = 8 + 2 * hidden_layers
    keys = jax.random.split(key, n_keys)
    p = {}

    w0, b0 = _init_linear(keys[0], 2, 1)           # fc0: Linear(2, 1)
    p["w0"], p["b0"] = w0.reshape(1, 2), b0.reshape(1, 1)
    p["g0"], p["be0"] = _init_bn(input_features)

    p["w1"], p["b1"] = _init_linear(keys[1], input_features, hidden_units)
    p["g1"], p["be1"] = _init_bn(hidden_units)

    def _stack(key_slice):
        ws, bs, gs, bes = [], [], [], []
        for kk in key_slice:
            w, b = _init_linear(kk, hidden_units, hidden_units)
            g, be = _init_bn(hidden_units)
            ws.append(w); bs.append(b); gs.append(g); bes.append(be)
        if not ws:   # L == 0: dummy stack; lives in HBM only, never DMA'd or read.
            ws = [jnp.zeros((hidden_units, hidden_units), jnp.float32)]
            bs = [jnp.zeros((1, hidden_units), jnp.float32)]
            gs = [jnp.ones((1, hidden_units), jnp.float32)]
            bes = [jnp.zeros((1, hidden_units), jnp.float32)]
        return (jnp.stack(ws), jnp.stack(bs), jnp.stack(gs), jnp.stack(bes))

    p["enc_w"], p["enc_b"], p["enc_g"], p["enc_be"] = _stack(keys[2:2 + hidden_layers])

    p["wmu"], p["bmu"] = _init_linear(keys[2 + hidden_layers], hidden_units, zdims)
    p["gmu"], p["bemu"] = _init_bn(zdims)
    p["wlv"], p["blv"] = _init_linear(keys[3 + hidden_layers], hidden_units, zdims)
    p["glv"], p["belv"] = _init_bn(zdims)

    p["w4"], p["b4"] = _init_linear(keys[4 + hidden_layers], zdims, hidden_units)
    p["g4"], p["be4"] = _init_bn(hidden_units)

    p["dec_w"], p["dec_b"], p["dec_g"], p["dec_be"] = _stack(
        keys[5 + hidden_layers:5 + 2 * hidden_layers])

    p["wrec"], p["brec"] = _init_linear(keys[5 + 2 * hidden_layers], hidden_units,
                                        input_features)
    p["grec"], p["berec"] = _init_bn(input_features)

    w5, b5 = _init_linear(keys[6 + 2 * hidden_layers], 1, 2)   # fc5: Linear(1, 2)
    p["w5"], p["b5"] = w5.reshape(1, 2), b5.reshape(1, 2)
    return p


def prepare_kernel_params(p):
    """One-time conversion of module-style params into kernel-ready form:
    bf16 matmul weights, fused mu|logvar head, biases that cancel under training-mode
    BatchNorm dropped (they cancel exactly in the mean subtraction)."""
    return {
        "w0": p["w0"], "b0": p["b0"],
        "g0": p["g0"], "be0": p["be0"],
        "w1": p["w1"].astype(jnp.bfloat16), "g1": p["g1"], "be1": p["be1"],
        "enc_w": p["enc_w"].astype(jnp.bfloat16),
        "enc_g": p["enc_g"], "enc_be": p["enc_be"],
        "whead": jnp.concatenate([p["wmu"], p["wlv"]], axis=1).astype(jnp.bfloat16),
        "ghead": jnp.concatenate([p["gmu"], p["glv"]], axis=1),
        "behead": jnp.concatenate([p["bemu"], p["belv"]], axis=1),
        "w4": p["w4"].astype(jnp.bfloat16), "g4": p["g4"], "be4": p["be4"],
        "dec_w": p["dec_w"].astype(jnp.bfloat16),
        "dec_g": p["dec_g"], "dec_be": p["dec_be"],
        "wrec": p["wrec"].astype(jnp.bfloat16),
        "grec": p["grec"], "berec": p["berec"],
        "w5": p["w5"], "b5": p["b5"],
    }


# ---------------------------------------------------------------------------
if __name__ == "__main__":
    # Small shapes consistent with the module's forward: x: [B, input_features, 2]
    B, F, Z, H, L = 8, 16, 4, 32, 2

    key = jax.random.PRNGKey(0)
    k_x, k_p, k_eps = jax.random.split(key, 3)
    x = jax.random.uniform(k_x, (B, F, 2), jnp.float32)
    raw_params = init_vae_params(k_p, F, Z, H, L)
    kp = prepare_kernel_params(raw_params)
    # torch.rand_like -> eps ~ U[0, 1); drawn host-side, consumed inside the kernel.
    eps = jax.random.uniform(k_eps, (B, Z), jnp.float32)

    fwd = jax.jit(functools.partial(vae_forward, hidden_layers=L))
    recon, mu, logvar = fwd(x, kp, eps)
    jax.block_until_ready((recon, mu, logvar))

    assert recon.shape == (B, F, 2)
    assert mu.shape == (B, Z) and logvar.shape == (B, Z)
    assert bool(jnp.all(jnp.isfinite(recon)))
    assert bool(jnp.all(jnp.isfinite(mu)))
    assert bool(jnp.all(jnp.isfinite(logvar)))

    r_recon, r_mu, r_lv = vae_reference(x, kp, eps, L)
    np.testing.assert_allclose(np.asarray(recon), np.asarray(r_recon),
                               atol=2e-2, rtol=2e-2)
    np.testing.assert_allclose(np.asarray(mu), np.asarray(r_mu), atol=2e-2, rtol=2e-2)
    np.testing.assert_allclose(np.asarray(logvar), np.asarray(r_lv),
                               atol=2e-2, rtol=2e-2)

    print("KERNEL_OK")
</pallas_src>

<mosaic_0001>
module attributes {stable_mosaic.version = 11 : i64} {
  func.func @vae_kernel(%arg0: memref<8x16xf32, #tpu.memory_space<vmem>>, %arg1: memref<8x4xf32, #tpu.memory_space<vmem>>, %arg2: memref<1x16xf32, #tpu.memory_space<vmem>>, %arg3: memref<1x16xf32, #tpu.memory_space<vmem>>, %arg4: memref<16x32xbf16, #tpu.memory_space<vmem>>, %arg5: memref<1x32xf32, #tpu.memory_space<vmem>>, %arg6: memref<1x32xf32, #tpu.memory_space<vmem>>, %arg7: memref<2x32x32xbf16, #tpu.memory_space<any>>, %arg8: memref<2x1x32xf32, #tpu.memory_space<vmem>>, %arg9: memref<2x1x32xf32, #tpu.memory_space<vmem>>, %arg10: memref<32x8xbf16, #tpu.memory_space<vmem>>, %arg11: memref<1x8xf32, #tpu.memory_space<vmem>>, %arg12: memref<1x8xf32, #tpu.memory_space<vmem>>, %arg13: memref<4x32xbf16, #tpu.memory_space<vmem>>, %arg14: memref<1x32xf32, #tpu.memory_space<vmem>>, %arg15: memref<1x32xf32, #tpu.memory_space<vmem>>, %arg16: memref<2x32x32xbf16, #tpu.memory_space<any>>, %arg17: memref<2x1x32xf32, #tpu.memory_space<vmem>>, %arg18: memref<2x1x32xf32, #tpu.memory_space<vmem>>, %arg19: memref<32x16xbf16, #tpu.memory_space<vmem>>, %arg20: memref<1x16xf32, #tpu.memory_space<vmem>>, %arg21: memref<1x16xf32, #tpu.memory_space<vmem>>, %arg22: memref<8x16xf32, #tpu.memory_space<vmem>>, %arg23: memref<8x8xf32, #tpu.memory_space<vmem>>, %arg24: memref<2x32x32xbf16, #tpu.memory_space<vmem>>, %arg25: memref<2x!tpu.dma_semaphore, #tpu.memory_space<semaphore_mem>>, %arg26: memref<2x32x32xbf16, #tpu.memory_space<vmem>>, %arg27: memref<2x!tpu.dma_semaphore, #tpu.memory_space<semaphore_mem>>) attributes {dimension_semantics = [], scalar_prefetch = 0 : i64, scratch_operands = 4 : i64, tpu.core_type = #tpu.core_type<tc>} {
    %c0_i32 = arith.constant 0 : i32
    %c0_i32_0 = arith.constant 0 : i32
    %c0_i32_1 = arith.constant 0 : i32
    %c0_i32_2 = arith.constant 0 : i32
    %c0_i32_3 = arith.constant 0 : i32
    %0 = tpu.memref_slice %arg7[%c0_i32, %c0_i32_2, %c0_i32_3] : memref<2x32x32xbf16, #tpu.memory_space<any>> -> memref<1x32x32xbf16, #tpu.memory_space<any>>
    %1 = tpu.memref_squeeze %0 : memref<1x32x32xbf16, #tpu.memory_space<any>> -> memref<32x32xbf16, #tpu.memory_space<any>>
    %c0_i32_4 = arith.constant 0 : i32
    %c0_i32_5 = arith.constant 0 : i32
    %2 = tpu.memref_slice %arg24[%c0_i32_0, %c0_i32_4, %c0_i32_5] : memref<2x32x32xbf16, #tpu.memory_space<vmem>> -> memref<1x32x32xbf16, #tpu.memory_space<vmem>>
    %3 = tpu.memref_squeeze %2 : memref<1x32x32xbf16, #tpu.memory_space<vmem>> -> memref<32x32xbf16, #tpu.memory_space<vmem>>
    %4 = tpu.memref_slice %arg25[%c0_i32_1] : memref<2x!tpu.dma_semaphore, #tpu.memory_space<semaphore_mem>> -> memref<1x!tpu.dma_semaphore, #tpu.memory_space<semaphore_mem>>
    %5 = tpu.memref_squeeze %4 : memref<1x!tpu.dma_semaphore, #tpu.memory_space<semaphore_mem>> -> memref<!tpu.dma_semaphore, #tpu.memory_space<semaphore_mem>>
    tpu.enqueue_dma source(%1 : memref<32x32xbf16, #tpu.memory_space<any>>) target(%3 : memref<32x32xbf16, #tpu.memory_space<vmem>>) target_semaphore(%5 : memref<!tpu.dma_semaphore, #tpu.memory_space<semaphore_mem>>)
    %c0 = arith.constant 0 : index
    %c0_6 = arith.constant 0 : index
    %6 = vector.load %arg0[%c0, %c0_6] : memref<8x16xf32, #tpu.memory_space<vmem>>, vector<8x16xf32>
    %c0_7 = arith.constant 0 : index
    %c0_8 = arith.constant 0 : index
    %7 = vector.load %arg2[%c0_7, %c0_8] : memref<1x16xf32, #tpu.memory_space<vmem>>, vector<1x16xf32>
    %c0_9 = arith.constant 0 : index
    %c0_10 = arith.constant 0 : index
    %8 = vector.load %arg3[%c0_9, %c0_10] : memref<1x16xf32, #tpu.memory_space<vmem>>, vector<1x16xf32>
    %cst = arith.constant dense<0.000000e+00> : vector<16xf32>
    %9 = vector.multi_reduction <add>, %6, %cst [0] : vector<8x16xf32> to vector<16xf32>
    %10 = vector.shape_cast %9 : vector<16xf32> to vector<1x16xf32>
    %cst_11 = arith.constant 8.000000e+00 : f32
    %11 = vector.broadcast %cst_11 : f32 to vector<1x16xf32>
    %12 = arith.divf %10, %11 : vector<1x16xf32>
    %13 = arith.mulf %6, %6 : vector<8x16xf32>
    %cst_12 = arith.constant dense<0.000000e+00> : vector<16xf32>
    %14 = vector.multi_reduction <add>, %13, %cst_12 [0] : vector<8x16xf32> to vector<16xf32>
    %15 = vector.shape_cast %14 : vector<16xf32> to vector<1x16xf32>
    %cst_13 = arith.constant 8.000000e+00 : f32
    %16 = vector.broadcast %cst_13 : f32 to vector<1x16xf32>
    %17 = arith.divf %15, %16 : vector<1x16xf32>
    %18 = arith.mulf %12, %12 : vector<1x16xf32>
    %19 = arith.subf %17, %18 : vector<1x16xf32>
    %cst_14 = arith.constant 0.000000e+00 : f32
    %20 = vector.broadcast %cst_14 : f32 to vector<1x16xf32>
    %21 = arith.maximumf %19, %20 : vector<1x16xf32>
    %cst_15 = arith.constant 9.99999974E-6 : f32
    %22 = vector.broadcast %cst_15 : f32 to vector<1x16xf32>
    %23 = arith.addf %21, %22 : vector<1x16xf32>
    %24 = math.rsqrt %23 : vector<1x16xf32>
    %25 = arith.mulf %7, %24 : vector<1x16xf32>
    %26 = arith.mulf %12, %25 : vector<1x16xf32>
    %27 = arith.subf %8, %26 : vector<1x16xf32>
    %28 = vector.broadcast %25 : vector<1x16xf32> to vector<8x16xf32>
    %29 = arith.mulf %6, %28 : vector<8x16xf32>
    %30 = vector.broadcast %27 : vector<1x16xf32> to vector<8x16xf32>
    %31 = arith.addf %29, %30 : vector<8x16xf32>
    %cst_16 = arith.constant 0.000000e+00 : f32
    %32 = vector.broadcast %cst_16 : f32 to vector<8x16xf32>
    %33 = arith.maximumf %31, %32 : vector<8x16xf32>
    %c0_17 = arith.constant 0 : index
    %c0_18 = arith.constant 0 : index
    %34 = vector.load %arg4[%c0_17, %c0_18] : memref<16x32xbf16, #tpu.memory_space<vmem>>, vector<16x32xbf16>
    %c0_19 = arith.constant 0 : index
    %c0_20 = arith.constant 0 : index
    %35 = vector.load %arg5[%c0_19, %c0_20] : memref<1x32xf32, #tpu.memory_space<vmem>>, vector<1x32xf32>
    %c0_21 = arith.constant 0 : index
    %c0_22 = arith.constant 0 : index
    %36 = vector.load %arg6[%c0_21, %c0_22] : memref<1x32xf32, #tpu.memory_space<vmem>>, vector<1x32xf32>
    %37 = arith.truncf %33 : vector<8x16xf32> to vector<8x16xbf16>
    %cst_23 = arith.constant dense<0.000000e+00> : vector<8x32xf32>
    %38 = tpu.matmul %37, %34, %cst_23 {dimension_numbers = #tpu.dot_dimension_numbers<[1], [0], [0], [1], [0, 0, 1, 1], [], []>} : vector<8x16xbf16>, vector<16x32xbf16>, vector<8x32xf32> -> vector<8x32xf32>
    %cst_24 = arith.constant dense<0.000000e+00> : vector<32xf32>
    %39 = vector.multi_reduction <add>, %38, %cst_24 [0] : vector<8x32xf32> to vector<32xf32>
    %40 = vector.shape_cast %39 : vector<32xf32> to vector<1x32xf32>
    %cst_25 = arith.constant 8.000000e+00 : f32
    %41 = vector.broadcast %cst_25 : f32 to vector<1x32xf32>
    %42 = arith.divf %40, %41 : vector<1x32xf32>
    %43 = arith.mulf %38, %38 : vector<8x32xf32>
    %cst_26 = arith.constant dense<0.000000e+00> : vector<32xf32>
    %44 = vector.multi_reduction <add>, %43, %cst_26 [0] : vector<8x32xf32> to vector<32xf32>
    %45 = vector.shape_cast %44 : vector<32xf32> to vector<1x32xf32>
    %cst_27 = arith.constant 8.000000e+00 : f32
    %46 = vector.broadcast %cst_27 : f32 to vector<1x32xf32>
    %47 = arith.divf %45, %46 : vector<1x32xf32>
    %48 = arith.mulf %42, %42 : vector<1x32xf32>
    %49 = arith.subf %47, %48 : vector<1x32xf32>
    %cst_28 = arith.constant 0.000000e+00 : f32
    %50 = vector.broadcast %cst_28 : f32 to vector<1x32xf32>
    %51 = arith.maximumf %49, %50 : vector<1x32xf32>
    %cst_29 = arith.constant 9.99999974E-6 : f32
    %52 = vector.broadcast %cst_29 : f32 to vector<1x32xf32>
    %53 = arith.addf %51, %52 : vector<1x32xf32>
    %54 = math.rsqrt %53 : vector<1x32xf32>
    %55 = arith.mulf %35, %54 : vector<1x32xf32>
    %56 = arith.mulf %42, %55 : vector<1x32xf32>
    %57 = arith.subf %36, %56 : vector<1x32xf32>
    %58 = vector.broadcast %55 : vector<1x32xf32> to vector<8x32xf32>
    %59 = arith.mulf %38, %58 : vector<8x32xf32>
    %60 = vector.broadcast %57 : vector<1x32xf32> to vector<8x32xf32>
    %61 = arith.addf %59, %60 : vector<8x32xf32>
    %cst_30 = arith.constant 0.000000e+00 : f32
    %62 = vector.broadcast %cst_30 : f32 to vector<8x32xf32>
    %63 = arith.maximumf %61, %62 : vector<8x32xf32>
    %c0_i32_31 = arith.constant 0 : i32
    %c0_i32_32 = arith.constant 0 : i32
    %c0_i32_33 = arith.constant 0 : i32
    %c0_i32_34 = arith.constant 0 : i32
    %c0_i32_35 = arith.constant 0 : i32
    %64 = tpu.memref_slice %arg7[%c0_i32_31, %c0_i32_34, %c0_i32_35] : memref<2x32x32xbf16, #tpu.memory_space<any>> -> memref<1x32x32xbf16, #tpu.memory_space<any>>
    %65 = tpu.memref_squeeze %64 : memref<1x32x32xbf16, #tpu.memory_space<any>> -> memref<32x32xbf16, #tpu.memory_space<any>>
    %c0_i32_36 = arith.constant 0 : i32
    %c0_i32_37 = arith.constant 0 : i32
    %66 = tpu.memref_slice %arg24[%c0_i32_32, %c0_i32_36, %c0_i32_37] : memref<2x32x32xbf16, #tpu.memory_space<vmem>> -> memref<1x32x32xbf16, #tpu.memory_space<vmem>>
    %67 = tpu.memref_squeeze %66 : memref<1x32x32xbf16, #tpu.memory_space<vmem>> -> memref<32x32xbf16, #tpu.memory_space<vmem>>
    %68 = tpu.memref_slice %arg25[%c0_i32_33] : memref<2x!tpu.dma_semaphore, #tpu.memory_space<semaphore_mem>> -> memref<1x!tpu.dma_semaphore, #tpu.memory_space<semaphore_mem>>
    %69 = tpu.memref_squeeze %68 : memref<1x!tpu.dma_semaphore, #tpu.memory_space<semaphore_mem>> -> memref<!tpu.dma_semaphore, #tpu.memory_space<semaphore_mem>>
    tpu.wait_dma2 semaphore(%69 : memref<!tpu.dma_semaphore, #tpu.memory_space<semaphore_mem>>) src(%65 : memref<32x32xbf16, #tpu.memory_space<any>>) dst(%67 : memref<32x32xbf16, #tpu.memory_space<vmem>>)
    %c1_i32 = arith.constant 1 : i32
    %c1_i32_38 = arith.constant 1 : i32
    %c1_i32_39 = arith.constant 1 : i32
    %c0_i32_40 = arith.constant 0 : i32
    %c0_i32_41 = arith.constant 0 : i32
    %70 = tpu.memref_slice %arg7[%c1_i32, %c0_i32_40, %c0_i32_41] : memref<2x32x32xbf16, #tpu.memory_space<any>> -> memref<1x32x32xbf16, #tpu.memory_space<any>>
    %71 = tpu.memref_squeeze %70 : memref<1x32x32xbf16, #tpu.memory_space<any>> -> memref<32x32xbf16, #tpu.memory_space<any>>
    %c0_i32_42 = arith.constant 0 : i32
    %c0_i32_43 = arith.constant 0 : i32
    %72 = tpu.memref_slice %arg24[%c1_i32_38, %c0_i32_42, %c0_i32_43] : memref<2x32x32xbf16, #tpu.memory_space<vmem>> -> memref<1x32x32xbf16, #tpu.memory_space<vmem>>
    %73 = tpu.memref_squeeze %72 : memref<1x32x32xbf16, #tpu.memory_space<vmem>> -> memref<32x32xbf16, #tpu.memory_space<vmem>>
    %74 = tpu.memref_slice %arg25[%c1_i32_39] : memref<2x!tpu.dma_semaphore, #tpu.memory_space<semaphore_mem>> -> memref<1x!tpu.dma_semaphore, #tpu.memory_space<semaphore_mem>>
    %75 = tpu.memref_squeeze %74 : memref<1x!tpu.dma_semaphore, #tpu.memory_space<semaphore_mem>> -> memref<!tpu.dma_semaphore, #tpu.memory_space<semaphore_mem>>
    tpu.enqueue_dma source(%71 : memref<32x32xbf16, #tpu.memory_space<any>>) target(%73 : memref<32x32xbf16, #tpu.memory_space<vmem>>) target_semaphore(%75 : memref<!tpu.dma_semaphore, #tpu.memory_space<semaphore_mem>>)
    %c0_44 = arith.constant 0 : index
    %c0_45 = arith.constant 0 : index
    %c0_46 = arith.constant 0 : index
    %76 = vector.load %arg24[%c0_44, %c0_45, %c0_46] : memref<2x32x32xbf16, #tpu.memory_space<vmem>>, vector<1x32x32xbf16>
    %77 = vector.shape_cast %76 : vector<1x32x32xbf16> to vector<32x32xbf16>
    %c0_47 = arith.constant 0 : index
    %c0_48 = arith.constant 0 : index
    %c0_49 = arith.constant 0 : index
    %78 = vector.load %arg8[%c0_47, %c0_48, %c0_49] : memref<2x1x32xf32, #tpu.memory_space<vmem>>, vector<1x1x32xf32>
    %79 = vector.shape_cast %78 : vector<1x1x32xf32> to vector<1x32xf32>
    %c0_50 = arith.constant 0 : index
    %c0_51 = arith.constant 0 : index
    %c0_52 = arith.constant 0 : index
    %80 = vector.load %arg9[%c0_50, %c0_51, %c0_52] : memref<2x1x32xf32, #tpu.memory_space<vmem>>, vector<1x1x32xf32>
    %81 = vector.shape_cast %80 : vector<1x1x32xf32> to vector<1x32xf32>
    %82 = arith.truncf %63 : vector<8x32xf32> to vector<8x32xbf16>
    %cst_53 = arith.constant dense<0.000000e+00> : vector<8x32xf32>
    %83 = tpu.matmul %82, %77, %cst_53 {dimension_numbers = #tpu.dot_dimension_numbers<[1], [0], [0], [1], [0, 0, 1, 1], [], []>} : vector<8x32xbf16>, vector<32x32xbf16>, vector<8x32xf32> -> vector<8x32xf32>
    %cst_54 = arith.constant dense<0.000000e+00> : vector<32xf32>
    %84 = vector.multi_reduction <add>, %83, %cst_54 [0] : vector<8x32xf32> to vector<32xf32>
    %85 = vector.shape_cast %84 : vector<32xf32> to vector<1x32xf32>
    %cst_55 = arith.constant 8.000000e+00 : f32
    %86 = vector.broadcast %cst_55 : f32 to vector<1x32xf32>
    %87 = arith.divf %85, %86 : vector<1x32xf32>
    %88 = arith.mulf %83, %83 : vector<8x32xf32>
    %cst_56 = arith.constant dense<0.000000e+00> : vector<32xf32>
    %89 = vector.multi_reduction <add>, %88, %cst_56 [0] : vector<8x32xf32> to vector<32xf32>
    %90 = vector.shape_cast %89 : vector<32xf32> to vector<1x32xf32>
    %cst_57 = arith.constant 8.000000e+00 : f32
    %91 = vector.broadcast %cst_57 : f32 to vector<1x32xf32>
    %92 = arith.divf %90, %91 : vector<1x32xf32>
    %93 = arith.mulf %87, %87 : vector<1x32xf32>
    %94 = arith.subf %92, %93 : vector<1x32xf32>
    %cst_58 = arith.constant 0.000000e+00 : f32
    %95 = vector.broadcast %cst_58 : f32 to vector<1x32xf32>
    %96 = arith.maximumf %94, %95 : vector<1x32xf32>
    %cst_59 = arith.constant 9.99999974E-6 : f32
    %97 = vector.broadcast %cst_59 : f32 to vector<1x32xf32>
    %98 = arith.addf %96, %97 : vector<1x32xf32>
    %99 = math.rsqrt %98 : vector<1x32xf32>
    %100 = arith.mulf %79, %99 : vector<1x32xf32>
    %101 = arith.mulf %87, %100 : vector<1x32xf32>
    %102 = arith.subf %81, %101 : vector<1x32xf32>
    %103 = vector.broadcast %100 : vector<1x32xf32> to vector<8x32xf32>
    %104 = arith.mulf %83, %103 : vector<8x32xf32>
    %105 = vector.broadcast %102 : vector<1x32xf32> to vector<8x32xf32>
    %106 = arith.addf %104, %105 : vector<8x32xf32>
    %cst_60 = arith.constant 0.000000e+00 : f32
    %107 = vector.broadcast %cst_60 : f32 to vector<8x32xf32>
    %108 = arith.maximumf %106, %107 : vector<8x32xf32>
    %c1_i32_61 = arith.constant 1 : i32
    %c1_i32_62 = arith.constant 1 : i32
    %c1_i32_63 = arith.constant 1 : i32
    %c0_i32_64 = arith.constant 0 : i32
    %c0_i32_65 = arith.constant 0 : i32
    %109 = tpu.memref_slice %arg7[%c1_i32_61, %c0_i32_64, %c0_i32_65] : memref<2x32x32xbf16, #tpu.memory_space<any>> -> memref<1x32x32xbf16, #tpu.memory_space<any>>
    %110 = tpu.memref_squeeze %109 : memref<1x32x32xbf16, #tpu.memory_space<any>> -> memref<32x32xbf16, #tpu.memory_space<any>>
    %c0_i32_66 = arith.constant 0 : i32
    %c0_i32_67 = arith.constant 0 : i32
    %111 = tpu.memref_slice %arg24[%c1_i32_62, %c0_i32_66, %c0_i32_67] : memref<2x32x32xbf16, #tpu.memory_space<vmem>> -> memref<1x32x32xbf16, #tpu.memory_space<vmem>>
    %112 = tpu.memref_squeeze %111 : memref<1x32x32xbf16, #tpu.memory_space<vmem>> -> memref<32x32xbf16, #tpu.memory_space<vmem>>
    %113 = tpu.memref_slice %arg25[%c1_i32_63] : memref<2x!tpu.dma_semaphore, #tpu.memory_space<semaphore_mem>> -> memref<1x!tpu.dma_semaphore, #tpu.memory_space<semaphore_mem>>
    %114 = tpu.memref_squeeze %113 : memref<1x!tpu.dma_semaphore, #tpu.memory_space<semaphore_mem>> -> memref<!tpu.dma_semaphore, #tpu.memory_space<semaphore_mem>>
    tpu.wait_dma2 semaphore(%114 : memref<!tpu.dma_semaphore, #tpu.memory_space<semaphore_mem>>) src(%110 : memref<32x32xbf16, #tpu.memory_space<any>>) dst(%112 : memref<32x32xbf16, #tpu.memory_space<vmem>>)
    %c1 = arith.constant 1 : index
    %c0_68 = arith.constant 0 : index
    %c0_69 = arith.constant 0 : index
    %115 = vector.load %arg24[%c1, %c0_68, %c0_69] : memref<2x32x32xbf16, #tpu.memory_space<vmem>>, vector<1x32x32xbf16>
    %116 = vector.shape_cast %115 : vector<1x32x32xbf16> to vector<32x32xbf16>
    %c1_70 = arith.constant 1 : index
    %c0_71 = arith.constant 0 : index
    %c0_72 = arith.constant 0 : index
    %117 = vector.load %arg8[%c1_70, %c0_71, %c0_72] : memref<2x1x32xf32, #tpu.memory_space<vmem>>, vector<1x1x32xf32>
    %118 = vector.shape_cast %117 : vector<1x1x32xf32> to vector<1x32xf32>
    %c1_73 = arith.constant 1 : index
    %c0_74 = arith.constant 0 : index
    %c0_75 = arith.constant 0 : index
    %119 = vector.load %arg9[%c1_73, %c0_74, %c0_75] : memref<2x1x32xf32, #tpu.memory_space<vmem>>, vector<1x1x32xf32>
    %120 = vector.shape_cast %119 : vector<1x1x32xf32> to vector<1x32xf32>
    %121 = arith.truncf %108 : vector<8x32xf32> to vector<8x32xbf16>
    %cst_76 = arith.constant dense<0.000000e+00> : vector<8x32xf32>
    %122 = tpu.matmul %121, %116, %cst_76 {dimension_numbers = #tpu.dot_dimension_numbers<[1], [0], [0], [1], [0, 0, 1, 1], [], []>} : vector<8x32xbf16>, vector<32x32xbf16>, vector<8x32xf32> -> vector<8x32xf32>
    %cst_77 = arith.constant dense<0.000000e+00> : vector<32xf32>
    %123 = vector.multi_reduction <add>, %122, %cst_77 [0] : vector<8x32xf32> to vector<32xf32>
    %124 = vector.shape_cast %123 : vector<32xf32> to vector<1x32xf32>
    %cst_78 = arith.constant 8.000000e+00 : f32
    %125 = vector.broadcast %cst_78 : f32 to vector<1x32xf32>
    %126 = arith.divf %124, %125 : vector<1x32xf32>
    %127 = arith.mulf %122, %122 : vector<8x32xf32>
    %cst_79 = arith.constant dense<0.000000e+00> : vector<32xf32>
    %128 = vector.multi_reduction <add>, %127, %cst_79 [0] : vector<8x32xf32> to vector<32xf32>
    %129 = vector.shape_cast %128 : vector<32xf32> to vector<1x32xf32>
    %cst_80 = arith.constant 8.000000e+00 : f32
    %130 = vector.broadcast %cst_80 : f32 to vector<1x32xf32>
    %131 = arith.divf %129, %130 : vector<1x32xf32>
    %132 = arith.mulf %126, %126 : vector<1x32xf32>
    %133 = arith.subf %131, %132 : vector<1x32xf32>
    %cst_81 = arith.constant 0.000000e+00 : f32
    %134 = vector.broadcast %cst_81 : f32 to vector<1x32xf32>
    %135 = arith.maximumf %133, %134 : vector<1x32xf32>
    %cst_82 = arith.constant 9.99999974E-6 : f32
    %136 = vector.broadcast %cst_82 : f32 to vector<1x32xf32>
    %137 = arith.addf %135, %136 : vector<1x32xf32>
    %138 = math.rsqrt %137 : vector<1x32xf32>
    %139 = arith.mulf %118, %138 : vector<1x32xf32>
    %140 = arith.mulf %126, %139 : vector<1x32xf32>
    %141 = arith.subf %120, %140 : vector<1x32xf32>
    %142 = vector.broadcast %139 : vector<1x32xf32> to vector<8x32xf32>
    %143 = arith.mulf %122, %142 : vector<8x32xf32>
    %144 = vector.broadcast %141 : vector<1x32xf32> to vector<8x32xf32>
    %145 = arith.addf %143, %144 : vector<8x32xf32>
    %cst_83 = arith.constant 0.000000e+00 : f32
    %146 = vector.broadcast %cst_83 : f32 to vector<8x32xf32>
    %147 = arith.maximumf %145, %146 : vector<8x32xf32>
    %c0_i32_84 = arith.constant 0 : i32
    %c0_i32_85 = arith.constant 0 : i32
    %c0_i32_86 = arith.constant 0 : i32
    %c0_i32_87 = arith.constant 0 : i32
    %c0_i32_88 = arith.constant 0 : i32
    %148 = tpu.memref_slice %arg16[%c0_i32_84, %c0_i32_87, %c0_i32_88] : memref<2x32x32xbf16, #tpu.memory_space<any>> -> memref<1x32x32xbf16, #tpu.memory_space<any>>
    %149 = tpu.memref_squeeze %148 : memref<1x32x32xbf16, #tpu.memory_space<any>> -> memref<32x32xbf16, #tpu.memory_space<any>>
    %c0_i32_89 = arith.constant 0 : i32
    %c0_i32_90 = arith.constant 0 : i32
    %150 = tpu.memref_slice %arg26[%c0_i32_85, %c0_i32_89, %c0_i32_90] : memref<2x32x32xbf16, #tpu.memory_space<vmem>> -> memref<1x32x32xbf16, #tpu.memory_space<vmem>>
    %151 = tpu.memref_squeeze %150 : memref<1x32x32xbf16, #tpu.memory_space<vmem>> -> memref<32x32xbf16, #tpu.memory_space<vmem>>
    %152 = tpu.memref_slice %arg27[%c0_i32_86] : memref<2x!tpu.dma_semaphore, #tpu.memory_space<semaphore_mem>> -> memref<1x!tpu.dma_semaphore, #tpu.memory_space<semaphore_mem>>
    %153 = tpu.memref_squeeze %152 : memref<1x!tpu.dma_semaphore, #tpu.memory_space<semaphore_mem>> -> memref<!tpu.dma_semaphore, #tpu.memory_space<semaphore_mem>>
    tpu.enqueue_dma source(%149 : memref<32x32xbf16, #tpu.memory_space<any>>) target(%151 : memref<32x32xbf16, #tpu.memory_space<vmem>>) target_semaphore(%153 : memref<!tpu.dma_semaphore, #tpu.memory_space<semaphore_mem>>)
    %c0_91 = arith.constant 0 : index
    %c0_92 = arith.constant 0 : index
    %154 = vector.load %arg10[%c0_91, %c0_92] : memref<32x8xbf16, #tpu.memory_space<vmem>>, vector<32x8xbf16>
    %c0_93 = arith.constant 0 : index
    %c0_94 = arith.constant 0 : index
    %155 = vector.load %arg11[%c0_93, %c0_94] : memref<1x8xf32, #tpu.memory_space<vmem>>, vector<1x8xf32>
    %c0_95 = arith.constant 0 : index
    %c0_96 = arith.constant 0 : index
    %156 = vector.load %arg12[%c0_95, %c0_96] : memref<1x8xf32, #tpu.memory_space<vmem>>, vector<1x8xf32>
    %157 = arith.truncf %147 : vector<8x32xf32> to vector<8x32xbf16>
    %cst_97 = arith.constant dense<0.000000e+00> : vector<8x8xf32>
    %158 = tpu.matmul %157, %154, %cst_97 {dimension_numbers = #tpu.dot_dimension_numbers<[1], [0], [0], [1], [0, 0, 1, 1], [], []>} : vector<8x32xbf16>, vector<32x8xbf16>, vector<8x8xf32> -> vector<8x8xf32>
    %cst_98 = arith.constant dense<0.000000e+00> : vector<8xf32>
    %159 = vector.multi_reduction <add>, %158, %cst_98 [0] : vector<8x8xf32> to vector<8xf32>
    %160 = vector.shape_cast %159 : vector<8xf32> to vector<1x8xf32>
    %cst_99 = arith.constant 8.000000e+00 : f32
    %161 = vector.broadcast %cst_99 : f32 to vector<1x8xf32>
    %162 = arith.divf %160, %161 : vector<1x8xf32>
    %163 = arith.mulf %158, %158 : vector<8x8xf32>
    %cst_100 = arith.constant dense<0.000000e+00> : vector<8xf32>
    %164 = vector.multi_reduction <add>, %163, %cst_100 [0] : vector<8x8xf32> to vector<8xf32>
    %165 = vector.shape_cast %164 : vector<8xf32> to vector<1x8xf32>
    %cst_101 = arith.constant 8.000000e+00 : f32
    %166 = vector.broadcast %cst_101 : f32 to vector<1x8xf32>
    %167 = arith.divf %165, %166 : vector<1x8xf32>
    %168 = arith.mulf %162, %162 : vector<1x8xf32>
    %169 = arith.subf %167, %168 : vector<1x8xf32>
    %cst_102 = arith.constant 0.000000e+00 : f32
    %170 = vector.broadcast %cst_102 : f32 to vector<1x8xf32>
    %171 = arith.maximumf %169, %170 : vector<1x8xf32>
    %cst_103 = arith.constant 9.99999974E-6 : f32
    %172 = vector.broadcast %cst_103 : f32 to vector<1x8xf32>
    %173 = arith.addf %171, %172 : vector<1x8xf32>
    %174 = math.rsqrt %173 : vector<1x8xf32>
    %175 = arith.mulf %155, %174 : vector<1x8xf32>
    %176 = arith.mulf %162, %175 : vector<1x8xf32>
    %177 = arith.subf %156, %176 : vector<1x8xf32>
    %178 = vector.broadcast %175 : vector<1x8xf32> to vector<8x8xf32>
    %179 = arith.mulf %158, %178 : vector<8x8xf32>
    %180 = vector.broadcast %177 : vector<1x8xf32> to vector<8x8xf32>
    %181 = arith.addf %179, %180 : vector<8x8xf32>
    %c0_104 = arith.constant 0 : index
    %c0_105 = arith.constant 0 : index
    %182 = vector.load %arg23[%c0_104, %c0_105] : memref<8x8xf32, #tpu.memory_space<vmem>>, vector<8x8xf32>
    tpu.vector_store %arg23[%c0_104, %c0_105], %181 {strides = array<i32>} : memref<8x8xf32, #tpu.memory_space<vmem>>, vector<8x8xf32>,
    %183 = vector.extract_strided_slice %181 {offsets = [0, 0], sizes = [8, 4], strides = [1, 1]} : vector<8x8xf32> to vector<8x4xf32>
    %184 = vector.extract_strided_slice %181 {offsets = [0, 4], sizes = [8, 4], strides = [1, 1]} : vector<8x8xf32> to vector<8x4xf32>
    %c0_106 = arith.constant 0 : index
    %c0_107 = arith.constant 0 : index
    %185 = vector.load %arg1[%c0_106, %c0_107] : memref<8x4xf32, #tpu.memory_space<vmem>>, vector<8x4xf32>
    %cst_108 = arith.constant 5.000000e-01 : f32
    %186 = vector.broadcast %cst_108 : f32 to vector<8x4xf32>
    %187 = arith.mulf %186, %184 : vector<8x4xf32>
    %188 = math.exp %187 : vector<8x4xf32>
    %189 = arith.mulf %185, %188 : vector<8x4xf32>
    %190 = arith.addf %183, %189 : vector<8x4xf32>
    %c0_109 = arith.constant 0 : index
    %c0_110 = arith.constant 0 : index
    %191 = vector.load %arg13[%c0_109, %c0_110] : memref<4x32xbf16, #tpu.memory_space<vmem>>, vector<4x32xbf16>
    %c0_111 = arith.constant 0 : index
    %c0_112 = arith.constant 0 : index
    %192 = vector.load %arg14[%c0_111, %c0_112] : memref<1x32xf32, #tpu.memory_space<vmem>>, vector<1x32xf32>
    %c0_113 = arith.constant 0 : index
    %c0_114 = arith.constant 0 : index
    %193 = vector.load %arg15[%c0_113, %c0_114] : memref<1x32xf32, #tpu.memory_space<vmem>>, vector<1x32xf32>
    %194 = arith.truncf %190 : vector<8x4xf32> to vector<8x4xbf16>
    %cst_115 = arith.constant dense<0.000000e+00> : vector<8x32xf32>
    %195 = tpu.matmul %194, %191, %cst_115 {dimension_numbers = #tpu.dot_dimension_numbers<[1], [0], [0], [1], [0, 0, 1, 1], [], []>} : vector<8x4xbf16>, vector<4x32xbf16>, vector<8x32xf32> -> vector<8x32xf32>
    %cst_116 = arith.constant dense<0.000000e+00> : vector<32xf32>
    %196 = vector.multi_reduction <add>, %195, %cst_116 [0] : vector<8x32xf32> to vector<32xf32>
    %197 = vector.shape_cast %196 : vector<32xf32> to vector<1x32xf32>
    %cst_117 = arith.constant 8.000000e+00 : f32
    %198 = vector.broadcast %cst_117 : f32 to vector<1x32xf32>
    %199 = arith.divf %197, %198 : vector<1x32xf32>
    %200 = arith.mulf %195, %195 : vector<8x32xf32>
    %cst_118 = arith.constant dense<0.000000e+00> : vector<32xf32>
    %201 = vector.multi_reduction <add>, %200, %cst_118 [0] : vector<8x32xf32> to vector<32xf32>
    %202 = vector.shape_cast %201 : vector<32xf32> to vector<1x32xf32>
    %cst_119 = arith.constant 8.000000e+00 : f32
    %203 = vector.broadcast %cst_119 : f32 to vector<1x32xf32>
    %204 = arith.divf %202, %203 : vector<1x32xf32>
    %205 = arith.mulf %199, %199 : vector<1x32xf32>
    %206 = arith.subf %204, %205 : vector<1x32xf32>
    %cst_120 = arith.constant 0.000000e+00 : f32
    %207 = vector.broadcast %cst_120 : f32 to vector<1x32xf32>
    %208 = arith.maximumf %206, %207 : vector<1x32xf32>
    %cst_121 = arith.constant 9.99999974E-6 : f32
    %209 = vector.broadcast %cst_121 : f32 to vector<1x32xf32>
    %210 = arith.addf %208, %209 : vector<1x32xf32>
    %211 = math.rsqrt %210 : vector<1x32xf32>
    %212 = arith.mulf %192, %211 : vector<1x32xf32>
    %213 = arith.mulf %199, %212 : vector<1x32xf32>
    %214 = arith.subf %193, %213 : vector<1x32xf32>
    %215 = vector.broadcast %212 : vector<1x32xf32> to vector<8x32xf32>
    %216 = arith.mulf %195, %215 : vector<8x32xf32>
    %217 = vector.broadcast %214 : vector<1x32xf32> to vector<8x32xf32>
    %218 = arith.addf %216, %217 : vector<8x32xf32>
    %cst_122 = arith.constant 0.000000e+00 : f32
    %219 = vector.broadcast %cst_122 : f32 to vector<8x32xf32>
    %220 = arith.maximumf %218, %219 : vector<8x32xf32>
    %c0_i32_123 = arith.constant 0 : i32
    %c0_i32_124 = arith.constant 0 : i32
    %c0_i32_125 = arith.constant 0 : i32
    %c0_i32_126 = arith.constant 0 : i32
    %c0_i32_127 = arith.constant 0 : i32
    %221 = tpu.memref_slice %arg16[%c0_i32_123, %c0_i32_126, %c0_i32_127] : memref<2x32x32xbf16, #tpu.memory_space<any>> -> memref<1x32x32xbf16, #tpu.memory_space<any>>
    %222 = tpu.memref_squeeze %221 : memref<1x32x32xbf16, #tpu.memory_space<any>> -> memref<32x32xbf16, #tpu.memory_space<any>>
    %c0_i32_128 = arith.constant 0 : i32
    %c0_i32_129 = arith.constant 0 : i32
    %223 = tpu.memref_slice %arg26[%c0_i32_124, %c0_i32_128, %c0_i32_129] : memref<2x32x32xbf16, #tpu.memory_space<vmem>> -> memref<1x32x32xbf16, #tpu.memory_space<vmem>>
    %224 = tpu.memref_squeeze %223 : memref<1x32x32xbf16, #tpu.memory_space<vmem>> -> memref<32x32xbf16, #tpu.memory_space<vmem>>
    %225 = tpu.memref_slice %arg27[%c0_i32_125] : memref<2x!tpu.dma_semaphore, #tpu.memory_space<semaphore_mem>> -> memref<1x!tpu.dma_semaphore, #tpu.memory_space<semaphore_mem>>
    %226 = tpu.memref_squeeze %225 : memref<1x!tpu.dma_semaphore, #tpu.memory_space<semaphore_mem>> -> memref<!tpu.dma_semaphore, #tpu.memory_space<semaphore_mem>>
    tpu.wait_dma2 semaphore(%226 : memref<!tpu.dma_semaphore, #tpu.memory_space<semaphore_mem>>) src(%222 : memref<32x32xbf16, #tpu.memory_space<any>>) dst(%224 : memref<32x32xbf16, #tpu.memory_space<vmem>>)
    %c1_i32_130 = arith.constant 1 : i32
    %c1_i32_131 = arith.constant 1 : i32
    %c1_i32_132 = arith.constant 1 : i32
    %c0_i32_133 = arith.constant 0 : i32
    %c0_i32_134 = arith.constant 0 : i32
    %227 = tpu.memref_slice %arg16[%c1_i32_130, %c0_i32_133, %c0_i32_134] : memref<2x32x32xbf16, #tpu.memory_space<any>> -> memref<1x32x32xbf16, #tpu.memory_space<any>>
    %228 = tpu.memref_squeeze %227 : memref<1x32x32xbf16, #tpu.memory_space<any>> -> memref<32x32xbf16, #tpu.memory_space<any>>
    %c0_i32_135 = arith.constant 0 : i32
    %c0_i32_136 = arith.constant 0 : i32
    %229 = tpu.memref_slice %arg26[%c1_i32_131, %c0_i32_135, %c0_i32_136] : memref<2x32x32xbf16, #tpu.memory_space<vmem>> -> memref<1x32x32xbf16, #tpu.memory_space<vmem>>
    %230 = tpu.memref_squeeze %229 : memref<1x32x32xbf16, #tpu.memory_space<vmem>> -> memref<32x32xbf16, #tpu.memory_space<vmem>>
    %231 = tpu.memref_slice %arg27[%c1_i32_132] : memref<2x!tpu.dma_semaphore, #tpu.memory_space<semaphore_mem>> -> memref<1x!tpu.dma_semaphore, #tpu.memory_space<semaphore_mem>>
    %232 = tpu.memref_squeeze %231 : memref<1x!tpu.dma_semaphore, #tpu.memory_space<semaphore_mem>> -> memref<!tpu.dma_semaphore, #tpu.memory_space<semaphore_mem>>
    tpu.enqueue_dma source(%228 : memref<32x32xbf16, #tpu.memory_space<any>>) target(%230 : memref<32x32xbf16, #tpu.memory_space<vmem>>) target_semaphore(%232 : memref<!tpu.dma_semaphore, #tpu.memory_space<semaphore_mem>>)
    %c0_137 = arith.constant 0 : index
    %c0_138 = arith.constant 0 : index
    %c0_139 = arith.constant 0 : index
    %233 = vector.load %arg26[%c0_137, %c0_138, %c0_139] : memref<2x32x32xbf16, #tpu.memory_space<vmem>>, vector<1x32x32xbf16>
    %234 = vector.shape_cast %233 : vector<1x32x32xbf16> to vector<32x32xbf16>
    %c0_140 = arith.constant 0 : index
    %c0_141 = arith.constant 0 : index
    %c0_142 = arith.constant 0 : index
    %235 = vector.load %arg17[%c0_140, %c0_141, %c0_142] : memref<2x1x32xf32, #tpu.memory_space<vmem>>, vector<1x1x32xf32>
    %236 = vector.shape_cast %235 : vector<1x1x32xf32> to vector<1x32xf32>
    %c0_143 = arith.constant 0 : index
    %c0_144 = arith.constant 0 : index
    %c0_145 = arith.constant 0 : index
    %237 = vector.load %arg18[%c0_143, %c0_144, %c0_145] : memref<2x1x32xf32, #tpu.memory_space<vmem>>, vector<1x1x32xf32>
    %238 = vector.shape_cast %237 : vector<1x1x32xf32> to vector<1x32xf32>
    %239 = arith.truncf %220 : vector<8x32xf32> to vector<8x32xbf16>
    %cst_146 = arith.constant dense<0.000000e+00> : vector<8x32xf32>
    %240 = tpu.matmul %239, %234, %cst_146 {dimension_numbers = #tpu.dot_dimension_numbers<[1], [0], [0], [1], [0, 0, 1, 1], [], []>} : vector<8x32xbf16>, vector<32x32xbf16>, vector<8x32xf32> -> vector<8x32xf32>
    %cst_147 = arith.constant dense<0.000000e+00> : vector<32xf32>
    %241 = vector.multi_reduction <add>, %240, %cst_147 [0] : vector<8x32xf32> to vector<32xf32>
    %242 = vector.shape_cast %241 : vector<32xf32> to vector<1x32xf32>
    %cst_148 = arith.constant 8.000000e+00 : f32
    %243 = vector.broadcast %cst_148 : f32 to vector<1x32xf32>
    %244 = arith.divf %242, %243 : vector<1x32xf32>
    %245 = arith.mulf %240, %240 : vector<8x32xf32>
    %cst_149 = arith.constant dense<0.000000e+00> : vector<32xf32>
    %246 = vector.multi_reduction <add>, %245, %cst_149 [0] : vector<8x32xf32> to vector<32xf32>
    %247 = vector.shape_cast %246 : vector<32xf32> to vector<1x32xf32>
    %cst_150 = arith.constant 8.000000e+00 : f32
    %248 = vector.broadcast %cst_150 : f32 to vector<1x32xf32>
    %249 = arith.divf %247, %248 : vector<1x32xf32>
    %250 = arith.mulf %244, %244 : vector<1x32xf32>
    %251 = arith.subf %249, %250 : vector<1x32xf32>
    %cst_151 = arith.constant 0.000000e+00 : f32
    %252 = vector.broadcast %cst_151 : f32 to vector<1x32xf32>
    %253 = arith.maximumf %251, %252 : vector<1x32xf32>
    %cst_152 = arith.constant 9.99999974E-6 : f32
    %254 = vector.broadcast %cst_152 : f32 to vector<1x32xf32>
    %255 = arith.addf %253, %254 : vector<1x32xf32>
    %256 = math.rsqrt %255 : vector<1x32xf32>
    %257 = arith.mulf %236, %256 : vector<1x32xf32>
    %258 = arith.mulf %244, %257 : vector<1x32xf32>
    %259 = arith.subf %238, %258 : vector<1x32xf32>
    %260 = vector.broadcast %257 : vector<1x32xf32> to vector<8x32xf32>
    %261 = arith.mulf %240, %260 : vector<8x32xf32>
    %262 = vector.broadcast %259 : vector<1x32xf32> to vector<8x32xf32>
    %263 = arith.addf %261, %262 : vector<8x32xf32>
    %cst_153 = arith.constant 0.000000e+00 : f32
    %264 = vector.broadcast %cst_153 : f32 to vector<8x32xf32>
    %265 = arith.maximumf %263, %264 : vector<8x32xf32>
    %c1_i32_154 = arith.constant 1 : i32
    %c1_i32_155 = arith.constant 1 : i32
    %c1_i32_156 = arith.constant 1 : i32
    %c0_i32_157 = arith.constant 0 : i32
    %c0_i32_158 = arith.constant 0 : i32
    %266 = tpu.memref_slice %arg16[%c1_i32_154, %c0_i32_157, %c0_i32_158] : memref<2x32x32xbf16, #tpu.memory_space<any>> -> memref<1x32x32xbf16, #tpu.memory_space<any>>
    %267 = tpu.memref_squeeze %266 : memref<1x32x32xbf16, #tpu.memory_space<any>> -> memref<32x32xbf16, #tpu.memory_space<any>>
    %c0_i32_159 = arith.constant 0 : i32
    %c0_i32_160 = arith.constant 0 : i32
    %268 = tpu.memref_slice %arg26[%c1_i32_155, %c0_i32_159, %c0_i32_160] : memref<2x32x32xbf16, #tpu.memory_space<vmem>> -> memref<1x32x32xbf16, #tpu.memory_space<vmem>>
    %269 = tpu.memref_squeeze %268 : memref<1x32x32xbf16, #tpu.memory_space<vmem>> -> memref<32x32xbf16, #tpu.memory_space<vmem>>
    %270 = tpu.memref_slice %arg27[%c1_i32_156] : memref<2x!tpu.dma_semaphore, #tpu.memory_space<semaphore_mem>> -> memref<1x!tpu.dma_semaphore, #tpu.memory_space<semaphore_mem>>
    %271 = tpu.memref_squeeze %270 : memref<1x!tpu.dma_semaphore, #tpu.memory_space<semaphore_mem>> -> memref<!tpu.dma_semaphore, #tpu.memory_space<semaphore_mem>>
    tpu.wait_dma2 semaphore(%271 : memref<!tpu.dma_semaphore, #tpu.memory_space<semaphore_mem>>) src(%267 : memref<32x32xbf16, #tpu.memory_space<any>>) dst(%269 : memref<32x32xbf16, #tpu.memory_space<vmem>>)
    %c1_161 = arith.constant 1 : index
    %c0_162 = arith.constant 0 : index
    %c0_163 = arith.constant 0 : index
    %272 = vector.load %arg26[%c1_161, %c0_162, %c0_163] : memref<2x32x32xbf16, #tpu.memory_space<vmem>>, vector<1x32x32xbf16>
    %273 = vector.shape_cast %272 : vector<1x32x32xbf16> to vector<32x32xbf16>
    %c1_164 = arith.constant 1 : index
    %c0_165 = arith.constant 0 : index
    %c0_166 = arith.constant 0 : index
    %274 = vector.load %arg17[%c1_164, %c0_165, %c0_166] : memref<2x1x32xf32, #tpu.memory_space<vmem>>, vector<1x1x32xf32>
    %275 = vector.shape_cast %274 : vector<1x1x32xf32> to vector<1x32xf32>
    %c1_167 = arith.constant 1 : index
    %c0_168 = arith.constant 0 : index
    %c0_169 = arith.constant 0 : index
    %276 = vector.load %arg18[%c1_167, %c0_168, %c0_169] : memref<2x1x32xf32, #tpu.memory_space<vmem>>, vector<1x1x32xf32>
    %277 = vector.shape_cast %276 : vector<1x1x32xf32> to vector<1x32xf32>
    %278 = arith.truncf %265 : vector<8x32xf32> to vector<8x32xbf16>
    %cst_170 = arith.constant dense<0.000000e+00> : vector<8x32xf32>
    %279 = tpu.matmul %278, %273, %cst_170 {dimension_numbers = #tpu.dot_dimension_numbers<[1], [0], [0], [1], [0, 0, 1, 1], [], []>} : vector<8x32xbf16>, vector<32x32xbf16>, vector<8x32xf32> -> vector<8x32xf32>
    %cst_171 = arith.constant dense<0.000000e+00> : vector<32xf32>
    %280 = vector.multi_reduction <add>, %279, %cst_171 [0] : vector<8x32xf32> to vector<32xf32>
    %281 = vector.shape_cast %280 : vector<32xf32> to vector<1x32xf32>
    %cst_172 = arith.constant 8.000000e+00 : f32
    %282 = vector.broadcast %cst_172 : f32 to vector<1x32xf32>
    %283 = arith.divf %281, %282 : vector<1x32xf32>
    %284 = arith.mulf %279, %279 : vector<8x32xf32>
    %cst_173 = arith.constant dense<0.000000e+00> : vector<32xf32>
    %285 = vector.multi_reduction <add>, %284, %cst_173 [0] : vector<8x32xf32> to vector<32xf32>
    %286 = vector.shape_cast %285 : vector<32xf32> to vector<1x32xf32>
    %cst_174 = arith.constant 8.000000e+00 : f32
    %287 = vector.broadcast %cst_174 : f32 to vector<1x32xf32>
    %288 = arith.divf %286, %287 : vector<1x32xf32>
    %289 = arith.mulf %283, %283 : vector<1x32xf32>
    %290 = arith.subf %288, %289 : vector<1x32xf32>
    %cst_175 = arith.constant 0.000000e+00 : f32
    %291 = vector.broadcast %cst_175 : f32 to vector<1x32xf32>
    %292 = arith.maximumf %290, %291 : vector<1x32xf32>
    %cst_176 = arith.constant 9.99999974E-6 : f32
    %293 = vector.broadcast %cst_176 : f32 to vector<1x32xf32>
    %294 = arith.addf %292, %293 : vector<1x32xf32>
    %295 = math.rsqrt %294 : vector<1x32xf32>
    %296 = arith.mulf %275, %295 : vector<1x32xf32>
    %297 = arith.mulf %283, %296 : vector<1x32xf32>
    %298 = arith.subf %277, %297 : vector<1x32xf32>
    %299 = vector.broadcast %296 : vector<1x32xf32> to vector<8x32xf32>
    %300 = arith.mulf %279, %299 : vector<8x32xf32>
    %301 = vector.broadcast %298 : vector<1x32xf32> to vector<8x32xf32>
    %302 = arith.addf %300, %301 : vector<8x32xf32>
    %cst_177 = arith.constant 0.000000e+00 : f32
    %303 = vector.broadcast %cst_177 : f32 to vector<8x32xf32>
    %304 = arith.maximumf %302, %303 : vector<8x32xf32>
    %c0_178 = arith.constant 0 : index
    %c0_179 = arith.constant 0 : index
    %305 = vector.load %arg19[%c0_178, %c0_179] : memref<32x16xbf16, #tpu.memory_space<vmem>>, vector<32x16xbf16>
    %c0_180 = arith.constant 0 : index
    %c0_181 = arith.constant 0 : index
    %306 = vector.load %arg20[%c0_180, %c0_181] : memref<1x16xf32, #tpu.memory_space<vmem>>, vector<1x16xf32>
    %c0_182 = arith.constant 0 : index
    %c0_183 = arith.constant 0 : index
    %307 = vector.load %arg21[%c0_182, %c0_183] : memref<1x16xf32, #tpu.memory_space<vmem>>, vector<1x16xf32>
    %308 = arith.truncf %304 : vector<8x32xf32> to vector<8x32xbf16>
    %cst_184 = arith.constant dense<0.000000e+00> : vector<8x16xf32>
    %309 = tpu.matmul %308, %305, %cst_184 {dimension_numbers = #tpu.dot_dimension_numbers<[1], [0], [0], [1], [0, 0, 1, 1], [], []>} : vector<8x32xbf16>, vector<32x16xbf16>, vector<8x16xf32> -> vector<8x16xf32>
    %cst_185 = arith.constant dense<0.000000e+00> : vector<16xf32>
    %310 = vector.multi_reduction <add>, %309, %cst_185 [0] : vector<8x16xf32> to vector<16xf32>
    %311 = vector.shape_cast %310 : vector<16xf32> to vector<1x16xf32>
    %cst_186 = arith.constant 8.000000e+00 : f32
    %312 = vector.broadcast %cst_186 : f32 to vector<1x16xf32>
    %313 = arith.divf %311, %312 : vector<1x16xf32>
    %314 = arith.mulf %309, %309 : vector<8x16xf32>
    %cst_187 = arith.constant dense<0.000000e+00> : vector<16xf32>
    %315 = vector.multi_reduction <add>, %314, %cst_187 [0] : vector<8x16xf32> to vector<16xf32>
    %316 = vector.shape_cast %315 : vector<16xf32> to vector<1x16xf32>
    %cst_188 = arith.constant 8.000000e+00 : f32
    %317 = vector.broadcast %cst_188 : f32 to vector<1x16xf32>
    %318 = arith.divf %316, %317 : vector<1x16xf32>
    %319 = arith.mulf %313, %313 : vector<1x16xf32>
    %320 = arith.subf %318, %319 : vector<1x16xf32>
    %cst_189 = arith.constant 0.000000e+00 : f32
    %321 = vector.broadcast %cst_189 : f32 to vector<1x16xf32>
    %322 = arith.maximumf %320, %321 : vector<1x16xf32>
    %cst_190 = arith.constant 9.99999974E-6 : f32
    %323 = vector.broadcast %cst_190 : f32 to vector<1x16xf32>
    %324 = arith.addf %322, %323 : vector<1x16xf32>
    %325 = math.rsqrt %324 : vector<1x16xf32>
    %326 = arith.mulf %306, %325 : vector<1x16xf32>
    %327 = arith.mulf %313, %326 : vector<1x16xf32>
    %328 = arith.subf %307, %327 : vector<1x16xf32>
    %329 = vector.broadcast %326 : vector<1x16xf32> to vector<8x16xf32>
    %330 = arith.mulf %309, %329 : vector<8x16xf32>
    %331 = vector.broadcast %328 : vector<1x16xf32> to vector<8x16xf32>
    %332 = arith.addf %330, %331 : vector<8x16xf32>
    %cst_191 = arith.constant 0.000000e+00 : f32
    %333 = vector.broadcast %cst_191 : f32 to vector<8x16xf32>
    %334 = arith.maximumf %332, %333 : vector<8x16xf32>
    %c0_192 = arith.constant 0 : index
    %c0_193 = arith.constant 0 : index
    %335 = vector.load %arg22[%c0_192, %c0_193] : memref<8x16xf32, #tpu.memory_space<vmem>>, vector<8x16xf32>
    tpu.vector_store %arg22[%c0_192, %c0_193], %334 {strides = array<i32>} : memref<8x16xf32, #tpu.memory_space<vmem>>, vector<8x16xf32>,
    return
  }
}

</mosaic_0001>

<llo_original>
// kernel: vae_forward.1
$region0: #{vae_forward.1}
  #allocation0 [shape = 'u32[]', space=smem, size = 0x4, offset = 0x4, fixed_abs, tag = 'smem constant byte address 0x4 - core index']
  #allocation1 [shape = 'u32[72,128]{1,0:T(1,128)}', space=vmem, size = 0x9000, scoped, tag = 'internal scratch']
  #allocation2 [shape = 'bf16[2,32,32]{2,1,0:T(8,128)(2,1)}', space=vmem, size = 0x4000, scoped, tag = 'scratch operand']
  #allocation3 [shape = 's32[2]{0}', space=sflag, size = 0x8, scoped, tag = 'scratch operand']
  #allocation4 [shape = 'bf16[2,32,32]{2,1,0:T(8,128)(2,1)}', space=vmem, size = 0x4000, scoped, tag = 'scratch operand']
  #allocation5 [shape = 's32[2]{0}', space=sflag, size = 0x8, scoped, tag = 'scratch operand']
  #allocation6 [shape = 's32[]', space=sflag, size = 0x4, offset = 0, fixed_abs, tag = 'sflag constant byte address 0x0 - dummy sync flag']
  #allocation7 [shape = 's32[]', space=sflag, size = 0x4, offset = 0, fixed_abs, tag = 'sflag constant byte address 0x0 - dummy sync flag']
  #allocation8 [shape = 's32[]', space=sflag, size = 0x4, offset = 0, fixed_abs, tag = 'sflag constant byte address 0x0 - dummy sync flag']
  #allocation9 [shape = 's32[]', space=sflag, size = 0x4, offset = 0, fixed_abs, tag = 'sflag constant byte address 0x0 - dummy sync flag']
  %s0 = inlined_call_operand.vmem [shape: f32[8,16], index: 0, kind: input, shape index: {}]
  %s1 = inlined_call_operand.vmem [shape: f32[8,4], index: 1, kind: input, shape index: {}]
  %s2 = inlined_call_operand.vmem [shape: f32[1,16], index: 2, kind: input, shape index: {}]
  %s3 = inlined_call_operand.vmem [shape: f32[1,16], index: 3, kind: input, shape index: {}]
  %s4 = inlined_call_operand.vmem [shape: bf16[16,32], index: 4, kind: input, shape index: {}]
  %s5 = inlined_call_operand.vmem [shape: f32[1,32], index: 5, kind: input, shape index: {}]
  %s6 = inlined_call_operand.vmem [shape: f32[1,32], index: 6, kind: input, shape index: {}]
  %s7 = inlined_call_operand.vmem [shape: bf16[2,32,32], index: 7, kind: input, shape index: {}]
  %s8 = inlined_call_operand.vmem [shape: f32[2,1,32], index: 8, kind: input, shape index: {}]
  %s9 = inlined_call_operand.vmem [shape: f32[2,1,32], index: 9, kind: input, shape index: {}]
  %s10 = inlined_call_operand.vmem [shape: bf16[32,8], index: 10, kind: input, shape index: {}]
  %s11 = inlined_call_operand.vmem [shape: f32[1,8], index: 11, kind: input, shape index: {}]
  %s12 = inlined_call_operand.vmem [shape: f32[1,8], index: 12, kind: input, shape index: {}]
  %s13 = inlined_call_operand.vmem [shape: bf16[4,32], index: 13, kind: input, shape index: {}]
  %s14 = inlined_call_operand.vmem [shape: f32[1,32], index: 14, kind: input, shape index: {}]
  %s15 = inlined_call_operand.vmem [shape: f32[1,32], index: 15, kind: input, shape index: {}]
  %s16 = inlined_call_operand.vmem [shape: bf16[2,32,32], index: 16, kind: input, shape index: {}]
  %s17 = inlined_call_operand.vmem [shape: f32[2,1,32], index: 17, kind: input, shape index: {}]
  %s18 = inlined_call_operand.vmem [shape: f32[2,1,32], index: 18, kind: input, shape index: {}]
  %s19 = inlined_call_operand.vmem [shape: bf16[32,16], index: 19, kind: input, shape index: {}]
  %s20 = inlined_call_operand.vmem [shape: f32[1,16], index: 20, kind: input, shape index: {}]
  %s21 = inlined_call_operand.vmem [shape: f32[1,16], index: 21, kind: input, shape index: {}]
  %s22 = inlined_call_operand.vmem [shape: f32[8,16], index: 22, kind: output, shape index: {0}]
  %s23 = inlined_call_operand.vmem [shape: f32[8,8], index: 23, kind: output, shape index: {1}]
  %24 = xla_tuple %s22, %s23
  %s25 = sld [smem:[#allocation0]]
  $region174: #{vae_forward.1} parent=0
    _
  %s27 = ssub.s32 1, %s25
  %s28 = scalar_select 0, %s27, %s25
  // Predicated region
  $region2: #{vae_forward.1} parent=0 // pred_check
    _
  $region3: #{vae_forward.1} parent=0 // pred_check_branch
    %30 = sbr.rel (0) target = $region5
  $region4: #{vae_forward.1} parent=0 // pred_region
    _
  $region5: #{vae_forward.1} parent=0 // pred_fallthru
    _
  // Predicated region
  $region6: #{vae_forward.1} parent=0 // pred_check
    _
  $region7: #{vae_forward.1} parent=0 // pred_check_branch
    %32 = sbr.rel (0) target = $region9
  $region8: #{vae_forward.1} parent=0 // pred_region
    _
  $region9: #{vae_forward.1} parent=0 // pred_fallthru
    _
  // Predicated region
  $region10: #{vae_forward.1} parent=0 // pred_check
    _
  $region11: #{vae_forward.1} parent=0 // pred_check_branch
    %34 = sbr.rel (0) target = $region13
  $region12: #{vae_forward.1} parent=0 // pred_region
    _
  $region13: #{vae_forward.1} parent=0 // pred_fallthru
    _
  // Predicated region
  $region14: #{vae_forward.1} parent=0 // pred_check
    _
  $region15: #{vae_forward.1} parent=0 // pred_check_branch
    %36 = sbr.rel (0) target = $region17
  $region16: #{vae_forward.1} parent=0 // pred_region
    _
  $region17: #{vae_forward.1} parent=0 // pred_fallthru
    _
  // Predicated region
  $region18: #{vae_forward.1} parent=0 // pred_check
    _
  $region19: #{vae_forward.1} parent=0 // pred_check_branch
    %38 = sbr.rel (0) target = $region21
  $region20: #{vae_forward.1} parent=0 // pred_region
    _
  $region21: #{vae_forward.1} parent=0 // pred_fallthru
    _
  // Predicated region
  $region22: #{vae_forward.1} parent=0 // pred_check
    _
  $region23: #{vae_forward.1} parent=0 // pred_check_branch
    %40 = sbr.rel (0) target = $region25
  $region24: #{vae_forward.1} parent=0 // pred_region
    _
  $region25: #{vae_forward.1} parent=0 // pred_fallthru
    _
  // Predicated region
  $region26: #{vae_forward.1} parent=0 // pred_check
    _
  $region27: #{vae_forward.1} parent=0 // pred_check_branch
    %42 = sbr.rel (0) target = $region29
  $region28: #{vae_forward.1} parent=0 // pred_region
    _
  $region29: #{vae_forward.1} parent=0 // pred_fallthru
    _
  // Predicated region
  $region30: #{vae_forward.1} parent=0 // pred_check
    _
  $region31: #{vae_forward.1} parent=0 // pred_check_branch
    %44 = sbr.rel (0) target = $region33
  $region32: #{vae_forward.1} parent=0 // pred_region
    _
  $region33: #{vae_forward.1} parent=0 // pred_fallthru
    _
  // Predicated region
  $region34: #{vae_forward.1} parent=0 // pred_check
    _
  $region35: #{vae_forward.1} parent=0 // pred_check_branch
    %46 = sbr.rel (0) target = $region37
  $region36: #{vae_forward.1} parent=0 // pred_region
    _
  $region37: #{vae_forward.1} parent=0 // pred_fallthru
    _
  // Predicated region
  $region38: #{vae_forward.1} parent=0 // pred_check
    _
  $region39: #{vae_forward.1} parent=0 // pred_check_branch
    %48 = sbr.rel (0) target = $region41
  $region40: #{vae_forward.1} parent=0 // pred_region
    _
  $region41: #{vae_forward.1} parent=0 // pred_fallthru
    _
  // Predicated region
  $region42: #{vae_forward.1} parent=0 // pred_check
    _
  $region43: #{vae_forward.1} parent=0 // pred_check_branch
    %50 = sbr.rel (0) target = $region45
  $region44: #{vae_forward.1} parent=0 // pred_region
    _
  $region45: #{vae_forward.1} parent=0 // pred_fallthru
    _
  // Predicated region
  $region46: #{vae_forward.1} parent=0 // pred_check
    _
  $region47: #{vae_forward.1} parent=0 // pred_check_branch
    %52 = sbr.rel (0) target = $region49
  $region48: #{vae_forward.1} parent=0 // pred_region
    _
  $region49: #{vae_forward.1} parent=0 // pred_fallthru
    _
  // Predicated region
  $region50: #{vae_forward.1} parent=0 // pred_check
    _
  $region51: #{vae_forward.1} parent=0 // pred_check_branch
    %54 = sbr.rel (0) target = $region53
  $region52: #{vae_forward.1} parent=0 // pred_region
    _
  $region53: #{vae_forward.1} parent=0 // pred_fallthru
    _
  // Predicated region
  $region54: #{vae_forward.1} parent=0 // pred_check
    _
  $region55: #{vae_forward.1} parent=0 // pred_check_branch
    %56 = sbr.rel (0) target = $region57
  $region56: #{vae_forward.1} parent=0 // pred_region
    _
  $region57: #{vae_forward.1} parent=0 // pred_fallthru
    _
  // Predicated region
  $region58: #{vae_forward.1} parent=0 // pred_check
    _
  $region59: #{vae_forward.1} parent=0 // pred_check_branch
    %58 = sbr.rel (0) target = $region61
  $region60: #{vae_forward.1} parent=0 // pred_region
    _
  $region61: #{vae_forward.1} parent=0 // pred_fallthru
    _
  // Predicated region
  $region62: #{vae_forward.1} parent=0 // pred_check
    _
  $region63: #{vae_forward.1} parent=0 // pred_check_branch
    %60 = sbr.rel (0) target = $region65
  $region64: #{vae_forward.1} parent=0 // pred_region
    _
  $region65: #{vae_forward.1} parent=0 // pred_fallthru
    _
  // Predicated region
  $region66: #{vae_forward.1} parent=0 // pred_check
    _
  $region67: #{vae_forward.1} parent=0 // pred_check_branch
    %62 = sbr.rel (0) target = $region69
  $region68: #{vae_forward.1} parent=0 // pred_region
    _
  $region69: #{vae_forward.1} parent=0 // pred_fallthru
    _
  // Predicated region
  $region70: #{vae_forward.1} parent=0 // pred_check
    _
  $region71: #{vae_forward.1} parent=0 // pred_check_branch
    %64 = sbr.rel (0) target = $region73
  $region72: #{vae_forward.1} parent=0 // pred_region
    _
  $region73: #{vae_forward.1} parent=0 // pred_fallthru
    _
  // Predicated region
  $region74: #{vae_forward.1} parent=0 // pred_check
    _
  $region75: #{vae_forward.1} parent=0 // pred_check_branch
    %66 = sbr.rel (0) target = $region77
  $region76: #{vae_forward.1} parent=0 // pred_region
    _
  $region77: #{vae_forward.1} parent=0 // pred_fallthru
    _
  // Predicated region
  $region78: #{vae_forward.1} parent=0 // pred_check
    _
  $region79: #{vae_forward.1} parent=0 // pred_check_branch
    %68 = sbr.rel (0) target = $region81
  $region80: #{vae_forward.1} parent=0 // pred_region
    _
  $region81: #{vae_forward.1} parent=0 // pred_fallthru
    _
  // Predicated region
  $region82: #{vae_forward.1} parent=0 // pred_check
    _
  $region83: #{vae_forward.1} parent=0 // pred_check_branch
    %71 = sbr.rel (0) target = $region85
  $region84: #{vae_forward.1} parent=0 // pred_region
    loop: start=0, step=1, limit=1
    $region86: #{vae_forward.1} parent=84 // loop_pre_header
      _
    $region87: #{vae_forward.1} parent=84 // loop_header
      %s73 = sphi 0, %s77
      %p74 = scmp.ge.s32.totalorder %s73, 1
      %s78 = sphi %s7, %s7
      %s79 = sphi [#allocation2], [#allocation2]
    $region88: #{vae_forward.1} parent=84 // loop_header_branch
      %76 = sbr.rel (%p74) target = $region92
    $region89: #{vae_forward.1} parent=84 // loop_body
      %v80 = vld [vmem:[%s78] sm:$0xff]
      %81 = vst [vmem:[%s79] sm:$0xff] %v80
      %v82 = vld [vmem:[%s78 + $0x8] sm:$0xff]
      %83 = vst [vmem:[%s79 + $0x8] sm:$0xff] %v82
    $region90: #{vae_forward.1} parent=84 // loop_footer
      %s77 = sadd.s32 1, %s73
    $region91: #{vae_forward.1} parent=84 // loop_footer_branch
      %72 = sbr.rel target = $region87
    $region92: #{vae_forward.1} parent=84 // loop_exit
      _
  $region85: #{vae_forward.1} parent=0 // pred_fallthru
    _
  // Predicated region
  $region93: #{vae_forward.1} parent=0 // pred_check
    _
  $region94: #{vae_forward.1} parent=0 // pred_check_branch
    %85 = sbr.rel target = $region96
  $region95: #{vae_forward.1} parent=0 // pred_region
    _
  $region96: #{vae_forward.1} parent=0 // pred_fallthru
    _
  // Predicated region
  $region97: #{vae_forward.1} parent=0 // pred_check
    _
  $region98: #{vae_forward.1} parent=0 // pred_check_branch
    %88 = sbr.rel (0) target = $region100
  $region99: #{vae_forward.1} parent=0 // pred_region
    %89 = vsyncadd [#allocation3], 256
  $region100: #{vae_forward.1} parent=0 // pred_fallthru
    _
  %v90 = vld [vmem:[%s0] sm:$0xff]
  %v91 = vld [vmem:[%s2] sm:$0x1]
  %v92 = vld [vmem:[%s3] sm:$0x1]
  %vm93 = vcmask 130048
  %v94 = vsel %vm93, %v90, 0.0
  %v95 = vrot.slane %v94, 4
  %v96 = vadd.f32 %v94, %v95
  %v97 = vrot.slane %v96, 2
  %v98 = vadd.f32 %v96, %v97
  %v99 = vrot.slane %v98, 1
  %v100 = vadd.f32 %v98, %v99
  %v101 = vrcp.pop 8.0
  %v102 = vmul.f32 8.0, %v101
  %v103 = vsub.f32 1.0, %v102
  %v104 = vmul.f32 %v101, %v103
  %v105 = vadd.f32 %v101, %v104
  %vm106 = vweird.f32 %v101
  %v107 = vsel %vm106, %v101, %v105
  %v108 = vmul.f32 %v100, %v107
  %v109 = vmul.f32 %v90, %v90
  %v110 = vsel %vm93, %v109, 0.0
  %v111 = vrot.slane %v110, 4
  %v112 = vadd.f32 %v110, %v111
  %v113 = vrot.slane %v112, 2
  %v114 = vadd.f32 %v112, %v113
  %v115 = vrot.slane %v114, 1
  %v116 = vadd.f32 %v114, %v115
  %v117 = vmul.f32 %v116, %v107
  %v118 = vmul.f32 %v108, %v108
  %v119 = vsub.f32 %v117, %v118
  %v120 = vmax.f32 %v119, 0.0
  %v121 = vadd.f32 %v120, 1e-05
  %v122 = vrsqrt.pop %v121
  %v123 = vmul.f32 %v122, %v121
  %v124 = vmul.f32 %v123, %v122
  %v125 = vmul.f32 0.5, %v124
  %v126 = vsub.f32 1.5, %v125
  %v127 = vmul.f32 %v122, %v126
  %vm128 = vweird.f32 %v121
  %vm129 = vweird.f32 %v122
  %vm130 = vmor %vm128, %vm129
  %v131 = vsel %vm130, %v122, %v127
  %v132 = vmul.f32 %v91, %v131
  %v133 = vmul.f32 %v108, %v132
  %v134 = vsub.f32 %v92, %v133
  %v136 = vperm.slane %v132, 0
  %v138 = vmul.f32 %v90, %v136
  %v140 = vperm.slane %v134, 0
  %v142 = vadd.f32 %v138, %v140
  %v143 = vmax.f32 %v142, 0.0
  %v144 = vld [vmem:[%s4] sm:$0xf]
  %v145 = vld [vmem:[%s4 + $0x4] sm:$0xf]
  %v146 = vld [vmem:[%s5] sm:$0x1]
  %v147 = vld [vmem:[%s6] sm:$0x1]
  %v148 = vpack.c.bf16 %v143, %v143
  %v151 = vunpack.c.l.b16 %v144
  %v152 = vunpack.c.l.b16 %v145
  %v153 = vpack.c.b16 %v152, %v151
  %v156 = vsel %vm93, %v148, 0
  %158 = vmatpush.bf16.msra.mxu0 0
  %159 = vmatpush.bf16.msra.mxu0 0
  %160 = vmatpush.bf16.msra.mxu0 0
  %161 = vmatpush.bf16.msra.mxu0 0
  %162 = vmatpush.bf16.msra.mxu0 0
  %163 = vmatpush.bf16.msra.mxu0 0
  %164 = vmatpush.bf16.msra.mxu0 0
  %165 = vmatpush.bf16.msra.mxu0 %v153
  %166 = vmatmul.bf16.gmra.mxu0 %v156
  %v167 = vpop.f32.mrf.mxu0
  %v168 = vadd.f32 0.0, %v167
  %v169 = vpop.f32.mrf.mxu0
  %170 = vdwg.mxu0
  %vm171 = vcmask 261120
  %v172 = vsel %vm171, %v168, 0.0
  %v173 = vrot.slane %v172, 4
  %v174 = vadd.f32 %v172, %v173
  %v175 = vrot.slane %v174, 2
  %v176 = vadd.f32 %v174, %v175
  %v177 = vrot.slane %v176, 1
  %v178 = vadd.f32 %v176, %v177
  %v179 = vmul.f32 %v178, %v107
  %v180 = vmul.f32 %v168, %v168
  %v181 = vsel %vm171, %v180, 0.0
  %v182 = vrot.slane %v181, 4
  %v183 = vadd.f32 %v181, %v182
  %v184 = vrot.slane %v183, 2
  %v185 = vadd.f32 %v183, %v184
  %v186 = vrot.slane %v185, 1
  %v187 = vadd.f32 %v185, %v186
  %v188 = vmul.f32 %v187, %v107
  %v189 = vmul.f32 %v179, %v179
  %v190 = vsub.f32 %v188, %v189
  %v191 = vmax.f32 %v190, 0.0
  %v192 = vadd.f32 %v191, 1e-05
  %v193 = vrsqrt.pop %v192
  %v194 = vmul.f32 %v193, %v192
  %v195 = vmul.f32 %v194, %v193
  %v196 = vmul.f32 0.5, %v195
  %v197 = vsub.f32 1.5, %v196
  %v198 = vmul.f32 %v193, %v197
  %vm199 = vweird.f32 %v192
  %vm200 = vweird.f32 %v193
  %vm201 = vmor %vm199, %vm200
  %v202 = vsel %vm201, %v193, %v198
  %v203 = vmul.f32 %v146, %v202
  %v204 = vmul.f32 %v179, %v203
  %v205 = vsub.f32 %v147, %v204
  %v207 = vperm.slane %v203, 0
  %v209 = vmul.f32 %v168, %v207
  %v211 = vperm.slane %v205, 0
  %v213 = vadd.f32 %v209, %v211
  %v214 = vmax.f32 %v213, 0.0
  %s215 = smul.u32 4, 4
  %s216 = smul.u32 %s215, 1
  %s217 = sshll.u32 %s216, 4
  %218 = dma.done [#allocation3], %s217
  %s219 = scalar_lea.vmem %s7, 16
  %s220 = scalar_lea.vmem [#allocation2], 16
  %s221 = scalar_lea.sflag [#allocation3], 1
  // Predicated region
  $region101: #{vae_forward.1} parent=0 // pred_check
    _
  $region102: #{vae_forward.1} parent=0 // pred_check_branch
    %223 = sbr.rel (0) target = $region104
  $region103: #{vae_forward.1} parent=0 // pred_region
    loop: start=0, step=1, limit=1
    $region105: #{vae_forward.1} parent=103 // loop_pre_header
      _
    $region106: #{vae_forward.1} parent=103 // loop_header
      %s225 = sphi 0, %s229
      %p226 = scmp.ge.s32.totalorder %s225, 1
      %s230 = sphi %s219, %s219
      %s231 = sphi %s220, %s220
    $region107: #{vae_forward.1} parent=103 // loop_header_branch
      %228 = sbr.rel (%p226) target = $region111
    $region108: #{vae_forward.1} parent=103 // loop_body
      %v232 = vld [vmem:[%s230] sm:$0xff]
      %233 = vst [vmem:[%s231] sm:$0xff] %v232
      %v234 = vld [vmem:[%s230 + $0x8] sm:$0xff]
      %235 = vst [vmem:[%s231 + $0x8] sm:$0xff] %v234
    $region109: #{vae_forward.1} parent=103 // loop_footer
      %s229 = sadd.s32 1, %s225
    $region110: #{vae_forward.1} parent=103 // loop_footer_branch
      %224 = sbr.rel target = $region106
    $region111: #{vae_forward.1} parent=103 // loop_exit
      _
  $region104: #{vae_forward.1} parent=0 // pred_fallthru
    _
  // Predicated region
  $region112: #{vae_forward.1} parent=0 // pred_check
    _
  $region113: #{vae_forward.1} parent=0 // pred_check_branch
    %237 = sbr.rel target = $region115
  $region114: #{vae_forward.1} parent=0 // pred_region
    _
  $region115: #{vae_forward.1} parent=0 // pred_fallthru
    _
  // Predicated region
  $region116: #{vae_forward.1} parent=0 // pred_check
    _
  $region117: #{vae_forward.1} parent=0 // pred_check_branch
    %240 = sbr.rel (0) target = $region119
  $region118: #{vae_forward.1} parent=0 // pred_region
    %241 = vsyncadd %s221, 256
  $region119: #{vae_forward.1} parent=0 // pred_fallthru
    _
  %v242 = vld [vmem:[#allocation2] sm:$0xf]
  %v243 = vld [vmem:[#allocation2 + $0x4] sm:$0xf]
  %v244 = vld [vmem:[#allocation2 + $0x8] sm:$0xf]
  %v245 = vld [vmem:[#allocation2 + $0xc] sm:$0xf]
  %v246 = vld [vmem:[%s8] sm:$0x1]
  %v247 = vld [vmem:[%s9] sm:$0x1]
  %v248 = vpack.c.bf16 %v214, %v214
  %v253 = vunpack.c.l.b16 %v242
  %v254 = vunpack.c.l.b16 %v243
  %v255 = vunpack.c.l.b16 %v244
  %v256 = vunpack.c.l.b16 %v245
  %v257 = vpack.c.b16 %v254, %v253
  %v258 = vpack.c.b16 %v256, %v255
  %v262 = vsel %vm171, %v248, 0
  %264 = vmatpush.bf16.msra.mxu0 0
  %265 = vmatpush.bf16.msra.mxu0 0
  %266 = vmatpush.bf16.msra.mxu0 0
  %267 = vmatpush.bf16.msra.mxu0 0
  %268 = vmatpush.bf16.msra.mxu0 0
  %269 = vmatpush.bf16.msra.mxu0 0
  %270 = vmatpush.bf16.msra.mxu0 %v258
  %271 = vmatpush.bf16.msra.mxu0 %v257
  %272 = vmatmul.bf16.gmra.mxu0 %v262
  %v273 = vpop.f32.mrf.mxu0
  %v274 = vadd.f32 0.0, %v273
  %v275 = vpop.f32.mrf.mxu0
  %276 = vdwg.mxu0
  %v277 = vsel %vm171, %v274, 0.0
  %v278 = vrot.slane %v277, 4
  %v279 = vadd.f32 %v277, %v278
  %v280 = vrot.slane %v279, 2
  %v281 = vadd.f32 %v279, %v280
  %v282 = vrot.slane %v281, 1
  %v283 = vadd.f32 %v281, %v282
  %v284 = vmul.f32 %v283, %v107
  %v285 = vmul.f32 %v274, %v274
  %v286 = vsel %vm171, %v285, 0.0
  %v287 = vrot.slane %v286, 4
  %v288 = vadd.f32 %v286, %v287
  %v289 = vrot.slane %v288, 2
  %v290 = vadd.f32 %v288, %v289
  %v291 = vrot.slane %v290, 1
  %v292 = vadd.f32 %v290, %v291
  %v293 = vmul.f32 %v292, %v107
  %v294 = vmul.f32 %v284, %v284
  %v295 = vsub.f32 %v293, %v294
  %v296 = vmax.f32 %v295, 0.0
  %v297 = vadd.f32 %v296, 1e-05
  %v298 = vrsqrt.pop %v297
  %v299 = vmul.f32 %v298, %v297
  %v300 = vmul.f32 %v299, %v298
  %v301 = vmul.f32 0.5, %v300
  %v302 = vsub.f32 1.5, %v301
  %v303 = vmul.f32 %v298, %v302
  %vm304 = vweird.f32 %v297
  %vm305 = vweird.f32 %v298
  %vm306 = vmor %vm304, %vm305
  %v307 = vsel %vm306, %v298, %v303
  %v308 = vmul.f32 %v246, %v307
  %v309 = vmul.f32 %v284, %v308
  %v310 = vsub.f32 %v247, %v309
  %v312 = vperm.slane %v308, 0
  %v314 = vmul.f32 %v274, %v312
  %v316 = vperm.slane %v310, 0
  %v318 = vadd.f32 %v314, %v316
  %v319 = vmax.f32 %v318, 0.0
  %s320 = sshll.u32 %s216, 4
  %321 = dma.done %s221, %s320
  %v322 = vld [vmem:[%s220] sm:$0xf]
  %v323 = vld [vmem:[%s220 + $0x4] sm:$0xf]
  %v324 = vld [vmem:[%s220 + $0x8] sm:$0xf]
  %v325 = vld [vmem:[%s220 + $0xc] sm:$0xf]
  %s326 = scalar_lea.vmem %s8, 1
  %v327 = vld [vmem:[%s326] sm:$0x1]
  %s328 = scalar_lea.vmem %s9, 1
  %v329 = vld [vmem:[%s328] sm:$0x1]
  %v330 = vpack.c.bf16 %v319, %v319
  %v335 = vunpack.c.l.b16 %v322
  %v336 = vunpack.c.l.b16 %v323
  %v337 = vunpack.c.l.b16 %v324
  %v338 = vunpack.c.l.b16 %v325
  %v339 = vpack.c.b16 %v336, %v335
  %v340 = vpack.c.b16 %v338, %v337
  %v344 = vsel %vm171, %v330, 0
  %346 = vmatpush.bf16.msra.mxu0 0
  %347 = vmatpush.bf16.msra.mxu0 0
  %348 = vmatpush.bf16.msra.mxu0 0
  %349 = vmatpush.bf16.msra.mxu0 0
  %350 = vmatpush.bf16.msra.mxu0 0
  %351 = vmatpush.bf16.msra.mxu0 0
  %352 = vmatpush.bf16.msra.mxu0 %v340
  %353 = vmatpush.bf16.msra.mxu0 %v339
  %354 = vmatmul.bf16.gmra.mxu0 %v344
  %v355 = vpop.f32.mrf.mxu0
  %v356 = vadd.f32 0.0, %v355
  %v357 = vpop.f32.mrf.mxu0
  %358 = vdwg.mxu0
  %v359 = vsel %vm171, %v356, 0.0
  %v360 = vrot.slane %v359, 4
  %v361 = vadd.f32 %v359, %v360
  %v362 = vrot.slane %v361, 2
  %v363 = vadd.f32 %v361, %v362
  %v364 = vrot.slane %v363, 1
  %v365 = vadd.f32 %v363, %v364
  %v366 = vmul.f32 %v365, %v107
  %v367 = vmul.f32 %v356, %v356
  %v368 = vsel %vm171, %v367, 0.0
  %v369 = vrot.slane %v368, 4
  %v370 = vadd.f32 %v368, %v369
  %v371 = vrot.slane %v370, 2
  %v372 = vadd.f32 %v370, %v371
  %v373 = vrot.slane %v372, 1
  %v374 = vadd.f32 %v372, %v373
  %v375 = vmul.f32 %v374, %v107
  %v376 = vmul.f32 %v366, %v366
  %v377 = vsub.f32 %v375, %v376
  %v378 = vmax.f32 %v377, 0.0
  %v379 = vadd.f32 %v378, 1e-05
  %v380 = vrsqrt.pop %v379
  %v381 = vmul.f32 %v380, %v379
  %v382 = vmul.f32 %v381, %v380
  %v383 = vmul.f32 0.5, %v382
  %v384 = vsub.f32 1.5, %v383
  %v385 = vmul.f32 %v380, %v384
  %vm386 = vweird.f32 %v379
  %vm387 = vweird.f32 %v380
  %vm388 = vmor %vm386, %vm387
  %v389 = vsel %vm388, %v380, %v385
  %v390 = vmul.f32 %v327, %v389
  %v391 = vmul.f32 %v366, %v390
  %v392 = vsub.f32 %v329, %v391
  %v394 = vperm.slane %v390, 0
  %v396 = vmul.f32 %v356, %v394
  %v398 = vperm.slane %v392, 0
  %v400 = vadd.f32 %v396, %v398
  %v401 = vmax.f32 %v400, 0.0
  // Predicated region
  $region120: #{vae_forward.1} parent=0 // pred_check
    _
  $region121: #{vae_forward.1} parent=0 // pred_check_branch
    %403 = sbr.rel (0) target = $region123
  $region122: #{vae_forward.1} parent=0 // pred_region
    loop: start=0, step=1, limit=1
    $region124: #{vae_forward.1} parent=122 // loop_pre_header
      _
    $region125: #{vae_forward.1} parent=122 // loop_header
      %s405 = sphi 0, %s409
      %p406 = scmp.ge.s32.totalorder %s405, 1
      %s410 = sphi %s16, %s16
      %s411 = sphi [#allocation4], [#allocation4]
    $region126: #{vae_forward.1} parent=122 // loop_header_branch
      %408 = sbr.rel (%p406) target = $region130
    $region127: #{vae_forward.1} parent=122 // loop_body
      %v412 = vld [vmem:[%s410] sm:$0xff]
      %413 = vst [vmem:[%s411] sm:$0xff] %v412
      %v414 = vld [vmem:[%s410 + $0x8] sm:$0xff]
      %415 = vst [vmem:[%s411 + $0x8] sm:$0xff] %v414
    $region128: #{vae_forward.1} parent=122 // loop_footer
      %s409 = sadd.s32 1, %s405
    $region129: #{vae_forward.1} parent=122 // loop_footer_branch
      %404 = sbr.rel target = $region125
    $region130: #{vae_forward.1} parent=122 // loop_exit
      _
  $region123: #{vae_forward.1} parent=0 // pred_fallthru
    _
  // Predicated region
  $region131: #{vae_forward.1} parent=0 // pred_check
    _
  $region132: #{vae_forward.1} parent=0 // pred_check_branch
    %417 = sbr.rel target = $region134
  $region133: #{vae_forward.1} parent=0 // pred_region
    _
  $region134: #{vae_forward.1} parent=0 // pred_fallthru
    _
  // Predicated region
  $region135: #{vae_forward.1} parent=0 // pred_check
    _
  $region136: #{vae_forward.1} parent=0 // pred_check_branch
    %420 = sbr.rel (0) target = $region138
  $region137: #{vae_forward.1} parent=0 // pred_region
    %421 = vsyncadd [#allocation5], 256
  $region138: #{vae_forward.1} parent=0 // pred_fallthru
    _
  %v422 = vld [vmem:[%s10] sm:$0xf]
  %v423 = vld [vmem:[%s10 + $0x4] sm:$0xf]
  %v424 = vld [vmem:[%s10 + $0x8] sm:$0xf]
  %v425 = vld [vmem:[%s10 + $0xc] sm:$0xf]
  %v426 = vld [vmem:[%s11] sm:$0x1]
  %v427 = vld [vmem:[%s12] sm:$0x1]
  %v428 = vpack.c.bf16 %v401, %v401
  %v433 = vunpack.c.l.b16 %v422
  %v434 = vunpack.c.l.b16 %v423
  %v435 = vunpack.c.l.b16 %v424
  %v436 = vunpack.c.l.b16 %v425
  %v437 = vpack.c.b16 %v434, %v433
  %v438 = vpack.c.b16 %v436, %v435
  %v442 = vsel %vm171, %v428, 0
  %444 = vmatpush.bf16.msra.mxu0 0
  %445 = vmatpush.bf16.msra.mxu0 0
  %446 = vmatpush.bf16.msra.mxu0 0
  %447 = vmatpush.bf16.msra.mxu0 0
  %448 = vmatpush.bf16.msra.mxu0 0
  %449 = vmatpush.bf16.msra.mxu0 0
  %450 = vmatpush.bf16.msra.mxu0 %v438
  %451 = vmatpush.bf16.msra.mxu0 %v437
  %452 = vmatmul.bf16.gmra.mxu0 %v442
  %v453 = vpop.f32.mrf.mxu0
  %v454 = vadd.f32 0.0, %v453
  %v455 = vpop.f32.mrf.mxu0
  %456 = vdwg.mxu0
  %vm457 = vcmask 64512
  %v458 = vsel %vm457, %v454, 0.0
  %v459 = vrot.slane %v458, 4
  %v460 = vadd.f32 %v458, %v459
  %v461 = vrot.slane %v460, 2
  %v462 = vadd.f32 %v460, %v461
  %v463 = vrot.slane %v462, 1
  %v464 = vadd.f32 %v462, %v463
  %v465 = vmul.f32 %v464, %v107
  %v466 = vmul.f32 %v454, %v454
  %v467 = vsel %vm457, %v466, 0.0
  %v468 = vrot.slane %v467, 4
  %v469 = vadd.f32 %v467, %v468
  %v470 = vrot.slane %v469, 2
  %v471 = vadd.f32 %v469, %v470
  %v472 = vrot.slane %v471, 1
  %v473 = vadd.f32 %v471, %v472
  %v474 = vmul.f32 %v473, %v107
  %v475 = vmul.f32 %v465, %v465
  %v476 = vsub.f32 %v474, %v475
  %v477 = vmax.f32 %v476, 0.0
  %v478 = vadd.f32 %v477, 1e-05
  %v479 = vrsqrt.pop %v478
  %v480 = vmul.f32 %v479, %v478
  %v481 = vmul.f32 %v480, %v479
  %v482 = vmul.f32 0.5, %v481
  %v483 = vsub.f32 1.5, %v482
  %v484 = vmul.f32 %v479, %v483
  %vm485 = vweird.f32 %v478
  %vm486 = vweird.f32 %v479
  %vm487 = vmor %vm485, %vm486
  %v488 = vsel %vm487, %v479, %v484
  %v489 = vmul.f32 %v426, %v488
  %v490 = vmul.f32 %v465, %v489
  %v491 = vsub.f32 %v427, %v490
  %v493 = vperm.slane %v489, 0
  %v495 = vmul.f32 %v454, %v493
  %v497 = vperm.slane %v491, 0
  %v499 = vadd.f32 %v495, %v497
  %500 = vst.msk [vmem:[%s23] sm:$0xff] %vm457, %v499
  %v501 = vld [vmem:[%s1] sm:$0xff]
  %v502 = vmul.f32 %v499, 0.5
  %v503 = vmul.f32 %v502, 1.442695
  %v504 = vpow.pop %v503
  %506 = vrot.lane.b32.xlu0 %v504, 124
  %v507 = vpop.permute.xlu0 %506
  %v509 = vmul.f32 %v501, %v507
  %v510 = vadd.f32 %v499, %v509
  %v511 = vld [vmem:[%s13] sm:$0x3]
  %v512 = vld [vmem:[%s14] sm:$0x1]
  %v513 = vld [vmem:[%s15] sm:$0x1]
  %v514 = vpack.c.bf16 %v510, %v510
  %vm515 = vcmask 31744
  %v517 = vsel %vm515, %v514, 0
  %vm519 = vcmask 1041408
  %v521 = vsel %vm519, %v511, 0
  %523 = vmatpush.bf16.msra.mxu0 0
  %524 = vmatpush.bf16.msra.mxu0 0
  %525 = vmatpush.bf16.msra.mxu0 0
  %526 = vmatpush.bf16.msra.mxu0 0
  %527 = vmatpush.bf16.msra.mxu0 0
  %528 = vmatpush.bf16.msra.mxu0 0
  %529 = vmatpush.bf16.msra.mxu0 0
  %530 = vmatpush.bf16.msra.mxu0 %v521
  %531 = vmatmul.bf16.gmra.mxu0 %v517
  %v532 = vpop.f32.mrf.mxu0
  %v533 = vadd.f32 0.0, %v532
  %v534 = vpop.f32.mrf.mxu0
  %535 = vdwg.mxu0
  %v536 = vsel %vm171, %v533, 0.0
  %v537 = vrot.slane %v536, 4
  %v538 = vadd.f32 %v536, %v537
  %v539 = vrot.slane %v538, 2
  %v540 = vadd.f32 %v538, %v539
  %v541 = vrot.slane %v540, 1
  %v542 = vadd.f32 %v540, %v541
  %v543 = vmul.f32 %v542, %v107
  %v544 = vmul.f32 %v533, %v533
  %v545 = vsel %vm171, %v544, 0.0
  %v546 = vrot.slane %v545, 4
  %v547 = vadd.f32 %v545, %v546
  %v548 = vrot.slane %v547, 2
  %v549 = vadd.f32 %v547, %v548
  %v550 = vrot.slane %v549, 1
  %v551 = vadd.f32 %v549, %v550
  %v552 = vmul.f32 %v551, %v107
  %v553 = vmul.f32 %v543, %v543
  %v554 = vsub.f32 %v552, %v553
  %v555 = vmax.f32 %v554, 0.0
  %v556 = vadd.f32 %v555, 1e-05
  %v557 = vrsqrt.pop %v556
  %v558 = vmul.f32 %v557, %v556
  %v559 = vmul.f32 %v558, %v557
  %v560 = vmul.f32 0.5, %v559
  %v561 = vsub.f32 1.5, %v560
  %v562 = vmul.f32 %v557, %v561
  %vm563 = vweird.f32 %v556
  %vm564 = vweird.f32 %v557
  %vm565 = vmor %vm563, %vm564
  %v566 = vsel %vm565, %v557, %v562
  %v567 = vmul.f32 %v512, %v566
  %v568 = vmul.f32 %v543, %v567
  %v569 = vsub.f32 %v513, %v568
  %v571 = vperm.slane %v567, 0
  %v573 = vmul.f32 %v533, %v571
  %v575 = vperm.slane %v569, 0
  %v577 = vadd.f32 %v573, %v575
  %v578 = vmax.f32 %v577, 0.0
  %s579 = sshll.u32 %s216, 4
  %580 = dma.done [#allocation5], %s579
  %s581 = scalar_lea.vmem %s16, 16
  %s582 = scalar_lea.vmem [#allocation4], 16
  %s583 = scalar_lea.sflag [#allocation5], 1
  // Predicated region
  $region139: #{vae_forward.1} parent=0 // pred_check
    _
  $region140: #{vae_forward.1} parent=0 // pred_check_branch
    %585 = sbr.rel (0) target = $region142
  $region141: #{vae_forward.1} parent=0 // pred_region
    loop: start=0, step=1, limit=1
    $region143: #{vae_forward.1} parent=141 // loop_pre_header
      _
    $region144: #{vae_forward.1} parent=141 // loop_header
      %s587 = sphi 0, %s591
      %p588 = scmp.ge.s32.totalorder %s587, 1
      %s592 = sphi %s581, %s581
      %s593 = sphi %s582, %s582
    $region145: #{vae_forward.1} parent=141 // loop_header_branch
      %590 = sbr.rel (%p588) target = $region149
    $region146: #{vae_forward.1} parent=141 // loop_body
      %v594 = vld [vmem:[%s592] sm:$0xff]
      %595 = vst [vmem:[%s593] sm:$0xff] %v594
      %v596 = vld [vmem:[%s592 + $0x8] sm:$0xff]
      %597 = vst [vmem:[%s593 + $0x8] sm:$0xff] %v596
    $region147: #{vae_forward.1} parent=141 // loop_footer
      %s591 = sadd.s32 1, %s587
    $region148: #{vae_forward.1} parent=141 // loop_footer_branch
      %586 = sbr.rel target = $region144
    $region149: #{vae_forward.1} parent=141 // loop_exit
      _
  $region142: #{vae_forward.1} parent=0 // pred_fallthru
    _
  // Predicated region
  $region150: #{vae_forward.1} parent=0 // pred_check
    _
  $region151: #{vae_forward.1} parent=0 // pred_check_branch
    %599 = sbr.rel target = $region153
  $region152: #{vae_forward.1} parent=0 // pred_region
    _
  $region153: #{vae_forward.1} parent=0 // pred_fallthru
    _
  // Predicated region
  $region154: #{vae_forward.1} parent=0 // pred_check
    _
  $region155: #{vae_forward.1} parent=0 // pred_check_branch
    %602 = sbr.rel (0) target = $region157
  $region156: #{vae_forward.1} parent=0 // pred_region
    %603 = vsyncadd %s583, 256
  $region157: #{vae_forward.1} parent=0 // pred_fallthru
    _
  %v604 = vld [vmem:[#allocation4] sm:$0xf]
  %v605 = vld [vmem:[#allocation4 + $0x4] sm:$0xf]
  %v606 = vld [vmem:[#allocation4 + $0x8] sm:$0xf]
  %v607 = vld [vmem:[#allocation4 + $0xc] sm:$0xf]
  %v608 = vld [vmem:[%s17] sm:$0x1]
  %v609 = vld [vmem:[%s18] sm:$0x1]
  %v610 = vpack.c.bf16 %v578, %v578
  %v615 = vunpack.c.l.b16 %v604
  %v616 = vunpack.c.l.b16 %v605
  %v617 = vunpack.c.l.b16 %v606
  %v618 = vunpack.c.l.b16 %v607
  %v619 = vpack.c.b16 %v616, %v615
  %v620 = vpack.c.b16 %v618, %v617
  %v624 = vsel %vm171, %v610, 0
  %626 = vmatpush.bf16.msra.mxu0 0
  %627 = vmatpush.bf16.msra.mxu0 0
  %628 = vmatpush.bf16.msra.mxu0 0
  %629 = vmatpush.bf16.msra.mxu0 0
  %630 = vmatpush.bf16.msra.mxu0 0
  %631 = vmatpush.bf16.msra.mxu0 0
  %632 = vmatpush.bf16.msra.mxu0 %v620
  %633 = vmatpush.bf16.msra.mxu0 %v619
  %634 = vmatmul.bf16.gmra.mxu0 %v624
  %v635 = vpop.f32.mrf.mxu0
  %v636 = vadd.f32 0.0, %v635
  %v637 = vpop.f32.mrf.mxu0
  %638 = vdwg.mxu0
  %v639 = vsel %vm171, %v636, 0.0
  %v640 = vrot.slane %v639, 4
  %v641 = vadd.f32 %v639, %v640
  %v642 = vrot.slane %v641, 2
  %v643 = vadd.f32 %v641, %v642
  %v644 = vrot.slane %v643, 1
  %v645 = vadd.f32 %v643, %v644
  %v646 = vmul.f32 %v645, %v107
  %v647 = vmul.f32 %v636, %v636
  %v648 = vsel %vm171, %v647, 0.0
  %v649 = vrot.slane %v648, 4
  %v650 = vadd.f32 %v648, %v649
  %v651 = vrot.slane %v650, 2
  %v652 = vadd.f32 %v650, %v651
  %v653 = vrot.slane %v652, 1
  %v654 = vadd.f32 %v652, %v653
  %v655 = vmul.f32 %v654, %v107
  %v656 = vmul.f32 %v646, %v646
  %v657 = vsub.f32 %v655, %v656
  %v658 = vmax.f32 %v657, 0.0
  %v659 = vadd.f32 %v658, 1e-05
  %v660 = vrsqrt.pop %v659
  %v661 = vmul.f32 %v660, %v659
  %v662 = vmul.f32 %v661, %v660
  %v663 = vmul.f32 0.5, %v662
  %v664 = vsub.f32 1.5, %v663
  %v665 = vmul.f32 %v660, %v664
  %vm666 = vweird.f32 %v659
  %vm667 = vweird.f32 %v660
  %vm668 = vmor %vm666, %vm667
  %v669 = vsel %vm668, %v660, %v665
  %v670 = vmul.f32 %v608, %v669
  %v671 = vmul.f32 %v646, %v670
  %v672 = vsub.f32 %v609, %v671
  %v674 = vperm.slane %v670, 0
  %v676 = vmul.f32 %v636, %v674
  %v678 = vperm.slane %v672, 0
  %v680 = vadd.f32 %v676, %v678
  %v681 = vmax.f32 %v680, 0.0
  %s682 = sshll.u32 %s216, 4
  %683 = dma.done %s583, %s682
  %v684 = vld [vmem:[%s582] sm:$0xf]
  %v685 = vld [vmem:[%s582 + $0x4] sm:$0xf]
  %v686 = vld [vmem:[%s582 + $0x8] sm:$0xf]
  %v687 = vld [vmem:[%s582 + $0xc] sm:$0xf]
  %s688 = scalar_lea.vmem %s17, 1
  %v689 = vld [vmem:[%s688] sm:$0x1]
  %s690 = scalar_lea.vmem %s18, 1
  %v691 = vld [vmem:[%s690] sm:$0x1]
  %v692 = vpack.c.bf16 %v681, %v681
  %v697 = vunpack.c.l.b16 %v684
  %v698 = vunpack.c.l.b16 %v685
  %v699 = vunpack.c.l.b16 %v686
  %v700 = vunpack.c.l.b16 %v687
  %v701 = vpack.c.b16 %v698, %v697
  %v702 = vpack.c.b16 %v700, %v699
  %v706 = vsel %vm171, %v692, 0
  %708 = vmatpush.bf16.msra.mxu0 0
  %709 = vmatpush.bf16.msra.mxu0 0
  %710 = vmatpush.bf16.msra.mxu0 0
  %711 = vmatpush.bf16.msra.mxu0 0
  %712 = vmatpush.bf16.msra.mxu0 0
  %713 = vmatpush.bf16.msra.mxu0 0
  %714 = vmatpush.bf16.msra.mxu0 %v702
  %715 = vmatpush.bf16.msra.mxu0 %v701
  %716 = vmatmul.bf16.gmra.mxu0 %v706
  %v717 = vpop.f32.mrf.mxu0
  %v718 = vadd.f32 0.0, %v717
  %v719 = vpop.f32.mrf.mxu0
  %720 = vdwg.mxu0
  %v721 = vsel %vm171, %v718, 0.0
  %v722 = vrot.slane %v721, 4
  %v723 = vadd.f32 %v721, %v722
  %v724 = vrot.slane %v723, 2
  %v725 = vadd.f32 %v723, %v724
  %v726 = vrot.slane %v725, 1
  %v727 = vadd.f32 %v725, %v726
  %v728 = vmul.f32 %v727, %v107
  %v729 = vmul.f32 %v718, %v718
  %v730 = vsel %vm171, %v729, 0.0
  %v731 = vrot.slane %v730, 4
  %v732 = vadd.f32 %v730, %v731
  %v733 = vrot.slane %v732, 2
  %v734 = vadd.f32 %v732, %v733
  %v735 = vrot.slane %v734, 1
  %v736 = vadd.f32 %v734, %v735
  %v737 = vmul.f32 %v736, %v107
  %v738 = vmul.f32 %v728, %v728
  %v739 = vsub.f32 %v737, %v738
  %v740 = vmax.f32 %v739, 0.0
  %v741 = vadd.f32 %v740, 1e-05
  %v742 = vrsqrt.pop %v741
  %v743 = vmul.f32 %v742, %v741
  %v744 = vmul.f32 %v743, %v742
  %v745 = vmul.f32 0.5, %v744
  %v746 = vsub.f32 1.5, %v745
  %v747 = vmul.f32 %v742, %v746
  %vm748 = vweird.f32 %v741
  %vm749 = vweird.f32 %v742
  %vm750 = vmor %vm748, %vm749
  %v751 = vsel %vm750, %v742, %v747
  %v752 = vmul.f32 %v689, %v751
  %v753 = vmul.f32 %v728, %v752
  %v754 = vsub.f32 %v691, %v753
  %v756 = vperm.slane %v752, 0
  %v758 = vmul.f32 %v718, %v756
  %v760 = vperm.slane %v754, 0
  %v762 = vadd.f32 %v758, %v760
  %v763 = vmax.f32 %v762, 0.0
  %v764 = vld [vmem:[%s19] sm:$0xf]
  %v765 = vld [vmem:[%s19 + $0x4] sm:$0xf]
  %v766 = vld [vmem:[%s19 + $0x8] sm:$0xf]
  %v767 = vld [vmem:[%s19 + $0xc] sm:$0xf]
  %v768 = vld [vmem:[%s20] sm:$0x1]
  %v769 = vld [vmem:[%s21] sm:$0x1]
  %v770 = vpack.c.bf16 %v763, %v763
  %v775 = vunpack.c.l.b16 %v764
  %v776 = vunpack.c.l.b16 %v765
  %v777 = vunpack.c.l.b16 %v766
  %v778 = vunpack.c.l.b16 %v767
  %v779 = vpack.c.b16 %v776, %v775
  %v780 = vpack.c.b16 %v778, %v777
  %v784 = vsel %vm171, %v770, 0
  %786 = vmatpush.bf16.msra.mxu0 0
  %787 = vmatpush.bf16.msra.mxu0 0
  %788 = vmatpush.bf16.msra.mxu0 0
  %789 = vmatpush.bf16.msra.mxu0 0
  %790 = vmatpush.bf16.msra.mxu0 0
  %791 = vmatpush.bf16.msra.mxu0 0
  %792 = vmatpush.bf16.msra.mxu0 %v780
  %793 = vmatpush.bf16.msra.mxu0 %v779
  %794 = vmatmul.bf16.gmra.mxu0 %v784
  %v795 = vpop.f32.mrf.mxu0
  %v796 = vadd.f32 0.0, %v795
  %v797 = vpop.f32.mrf.mxu0
  %798 = vdwg.mxu0
  %v799 = vsel %vm93, %v796, 0.0
  %v800 = vrot.slane %v799, 4
  %v801 = vadd.f32 %v799, %v800
  %v802 = vrot.slane %v801, 2
  %v803 = vadd.f32 %v801, %v802
  %v804 = vrot.slane %v803, 1
  %v805 = vadd.f32 %v803, %v804
  %v806 = vmul.f32 %v805, %v107
  %v807 = vmul.f32 %v796, %v796
  %v808 = vsel %vm93, %v807, 0.0
  %v809 = vrot.slane %v808, 4
  %v810 = vadd.f32 %v808, %v809
  %v811 = vrot.slane %v810, 2
  %v812 = vadd.f32 %v810, %v811
  %v813 = vrot.slane %v812, 1
  %v814 = vadd.f32 %v812, %v813
  %v815 = vmul.f32 %v814, %v107
  %v816 = vmul.f32 %v806, %v806
  %v817 = vsub.f32 %v815, %v816
  %v818 = vmax.f32 %v817, 0.0
  %v819 = vadd.f32 %v818, 1e-05
  %v820 = vrsqrt.pop %v819
  %v821 = vmul.f32 %v820, %v819
  %v822 = vmul.f32 %v821, %v820
  %v823 = vmul.f32 0.5, %v822
  %v824 = vsub.f32 1.5, %v823
  %v825 = vmul.f32 %v820, %v824
  %vm826 = vweird.f32 %v819
  %vm827 = vweird.f32 %v820
  %vm828 = vmor %vm826, %vm827
  %v829 = vsel %vm828, %v820, %v825
  %v830 = vmul.f32 %v768, %v829
  %v831 = vmul.f32 %v806, %v830
  %v832 = vsub.f32 %v769, %v831
  %v834 = vperm.slane %v830, 0
  %v836 = vmul.f32 %v796, %v834
  %v838 = vperm.slane %v832, 0
  %v840 = vadd.f32 %v836, %v838
  %v841 = vmax.f32 %v840, 0.0
  %842 = vst.msk [vmem:[%s22] sm:$0xff] %vm93, %v841
  // Predicated region
  $region158: #{vae_forward.1} parent=0 // pred_check
    _
  $region159: #{vae_forward.1} parent=0 // pred_check_branch
    %844 = sbr.rel (0) target = $region161
  $region160: #{vae_forward.1} parent=0 // pred_region
    _
  $region161: #{vae_forward.1} parent=0 // pred_fallthru
    _
  // Predicated region
  $region162: #{vae_forward.1} parent=0 // pred_check
    _
  $region163: #{vae_forward.1} parent=0 // pred_check_branch
    %846 = sbr.rel (0) target = $region165
  $region164: #{vae_forward.1} parent=0 // pred_region
    _
  $region165: #{vae_forward.1} parent=0 // pred_fallthru
    _
  // Predicated region
  $region166: #{vae_forward.1} parent=0 // pred_check
    _
  $region167: #{vae_forward.1} parent=0 // pred_check_branch
    %848 = sbr.rel (0) target = $region169
  $region168: #{vae_forward.1} parent=0 // pred_region
    _
  $region169: #{vae_forward.1} parent=0 // pred_fallthru
    _
  // Predicated region
  $region170: #{vae_forward.1} parent=0 // pred_check
    _
  $region171: #{vae_forward.1} parent=0 // pred_check_branch
    %850 = sbr.rel (0) target = $region173
  $region172: #{vae_forward.1} parent=0 // pred_region
    _
  $region173: #{vae_forward.1} parent=0 // pred_fallthru
    _
  %851 = vsyncmov [#allocation3]
  %s852 = vpop.sfrf %851
  %p853 = scmp.eq.s32.totalorder %s852, 0
  %p854 = pneg %p853
  %856 = shalt.err (%p854)
  %s857 = scalar_lea.sflag [#allocation3], 1
  %858 = vsyncmov %s857
  %s859 = vpop.sfrf %858
  %p860 = scmp.eq.s32.totalorder %s859, 0
  %p861 = pneg %p860
  %863 = shalt.err (%p861)
  %864 = vsyncmov [#allocation5]
  %s865 = vpop.sfrf %864
  %p866 = scmp.eq.s32.totalorder %s865, 0
  %p867 = pneg %p866
  %869 = shalt.err (%p867)
  %s870 = scalar_lea.sflag [#allocation5], 1
  %871 = vsyncmov %s870
  %s872 = vpop.sfrf %871
  %p873 = scmp.eq.s32.totalorder %s872, 0
  %p874 = pneg %p873
  %876 = shalt.err (%p874)

</llo_original>
